<compile_context>
chip_gen: v7x
topology: tpu7x:2x2x1
jax: 0.10.0
libtpu: 0.0.40
codegen_flags: <defaults>
</compile_context>

<pallas_src>
import functools

import jax
import jax.numpy as jnp
from jax.experimental import pallas as pl
from jax.experimental.pallas import tpu as pltpu


def _pick_tile(n, cap, aligns=(8,)):
    """Largest t <= cap with n % t == 0 and t % align == 0 (preferring the
    first alignment in `aligns`); falls back to the full dim (always legal)."""
    if n <= cap:
        return n
    for align in aligns:
        t = cap - (cap % align)
        while t > 0:
            if n % t == 0:
                return t
            t -= align
    return n


def _op_kernel(idx_ref, ws_ref, adj_ref, x_ref, o_ref, *scratch,
               tk, resident_x, use_acc):
    # idx_ref: SMEM scalar-prefetch ref, shape (1,), int32 (selected op index)
    # ws_ref : SMEM ref, shape (K,) (architecture weights)
    # adj_ref: VMEM tile (tm, tk) of adjs[idx]
    # x_ref  : VMEM block of x -- full (N, Dp) when resident_x, else (tk, Dp)
    # o_ref  : VMEM tile (tm, Dp) of output (resident across the k sweep)
    # scratch: optional f32 accumulator (only when the output is not f32)
    k = pl.program_id(1)
    nk = pl.num_programs(1)
    acc_ref = scratch[0] if use_acc else o_ref

    @pl.when(k == 0)
    def _():
        acc_ref[...] = jnp.zeros_like(acc_ref)

    if resident_x:
        off = pl.multiple_of(k * tk, tk)
        x_blk = x_ref[pl.ds(off, tk), :]
    else:
        x_blk = x_ref[...]

    acc_ref[...] += jnp.dot(adj_ref[...], x_blk,
                            preferred_element_type=jnp.float32)

    @pl.when(k == nk - 1)
    def _():
        w = ws_ref[idx_ref[0]].astype(jnp.float32)  # scalar ws[idx]
        o_ref[...] = (w * acc_ref[...]).astype(o_ref.dtype)


def op_forward(x, adjs, ws, idx, *, tm_cap=1024, tk_cap=1024,
               stream_dtype=None):
    """Pallas implementation of Op.forward: ws[idx] * (adjs[idx] @ x).

    stream_dtype: if set (e.g. jnp.bfloat16), the adjacency stack and x are
    streamed in that dtype (f32 accumulation is kept).  This halves the
    HBM traffic the kernel is bound on; numerics change accordingly.
    """
    N, D = x.shape
    K = adjs.shape[0]
    assert adjs.shape == (K, N, N)
    out_dtype = x.dtype

    if stream_dtype is not None:
        adjs = adjs.astype(stream_dtype)
        x = x.astype(stream_dtype)

    # Lane-dense output: pad the (untiled) feature axis to a multiple of 128.
    Dp = ((D + 127) // 128) * 128
    if Dp != D:
        x = jnp.pad(x, ((0, 0), (0, Dp - D)))

    in_bytes = jnp.dtype(x.dtype).itemsize
    adj_bytes = jnp.dtype(adjs.dtype).itemsize
    out_bytes = jnp.dtype(out_dtype).itemsize
    use_acc = out_dtype != jnp.float32

    # ---- generation-aware VMEM sizing ----
    try:
        vmem_cap = int(pltpu.get_tpu_info().vmem_capacity_bytes)
    except Exception:
        vmem_cap = 64 * 1024 * 1024      # conservative (v7x per-TC VMEM)
    vmem_budget = max(int(0.42 * vmem_cap), 16 * 1024 * 1024)
    vmem_limit = max(int(0.80 * vmem_cap), 32 * 1024 * 1024)

    # ---- tile selection (budget-driven, biggest tiles that fit) ----
    align_m = 8 * max(1, 4 // out_bytes)            # 8 f32 / 16 bf16 / 32 int8
    tm = _pick_tile(N, tm_cap, (align_m,))
    tk = _pick_tile(N, tk_cap, (256, 128))          # MXU-friendly contraction

    # >= 2 blocks on the parallel i axis so both v7x TensorCores get work.
    if N // tm < 2:
        cand = _pick_tile(N, N // 2, (align_m,))
        if cand < N and N % cand == 0:
            tm = cand

    def _fixed_bytes(tm_, tk_):
        b = 2 * tm_ * tk_ * adj_bytes            # adj tile, double-buffered
        b += 2 * tm_ * Dp * out_bytes            # output tile, double-buffered
        b += 2 * tk_ * Dp * in_bytes             # streamed x tile (worst case)
        if use_acc:
            b += tm_ * Dp * 4
        return b

    for _ in range(64):
        if _fixed_bytes(tm, tk) <= vmem_budget:
            break
        new_tm, new_tk = tm, tk
        if tk > 256:
            cand = _pick_tile(N, max(tk // 2, 256), (256, 128))
            if cand < tk:
                new_tk = cand
        if new_tk == tk and tk > 128:
            cand = _pick_tile(N, 128, (128,))
            if cand < tk:
                new_tk = cand
        if new_tk == tk and tm > align_m:
            cand = _pick_tile(N, max(tm // 2, align_m), (align_m,))
            if cand < tm:
                new_tm = cand
        if new_tm == tm and new_tk == tk:
            break
        tm, tk = new_tm, new_tk

    base_bytes = (2 * tm * tk * adj_bytes + 2 * tm * Dp * out_bytes
                  + (tm * Dp * 4 if use_acc else 0))

    # TODO(synk): torch would raise on an out-of-range idx; we clip instead.
    idx_arr = jnp.clip(jnp.asarray(idx, dtype=jnp.int32).reshape((1,)),
                       0, K - 1)

    grid = (N // tm, N // tk)

    def _build(single_buffer_x):
        x_factor = 1 if single_buffer_x else 2
        resident_x = (base_bytes + x_factor * N * Dp * in_bytes) <= vmem_budget
        if resident_x:
            if single_buffer_x:
                # constant index map => the block never changes; single buffer
                x_spec = pl.BlockSpec((N, Dp), lambda i, k, idx_ref: (0, 0),
                                      pipeline_mode=pl.Buffered(1))
            else:
                x_spec = pl.BlockSpec((N, Dp), lambda i, k, idx_ref: (0, 0))
        else:
            x_spec = pl.BlockSpec((tk, Dp), lambda i, k, idx_ref: (k, 0))

        in_specs = [
            # ws lives whole in SMEM (tiny vector of architecture weights)
            pl.BlockSpec(memory_space=pltpu.MemorySpace.SMEM),
            # adjs: select matrix idx via the scalar-prefetched index; leading
            # axis squeezed out of the kernel view (only adjs[idx] is fetched).
            pl.BlockSpec((None, tm, tk),
                         lambda i, k, idx_ref: (idx_ref[0], i, k)),
            x_spec,
        ]
        out_specs = pl.BlockSpec((tm, Dp), lambda i, k, idx_ref: (i, 0))
        scratch_shapes = ([pltpu.VMEM((tm, Dp), jnp.float32)]
                          if use_acc else [])

        kernel = functools.partial(_op_kernel, tk=tk,
                                   resident_x=resident_x, use_acc=use_acc)
        return pl.pallas_call(
            kernel,
            out_shape=jax.ShapeDtypeStruct((N, Dp), out_dtype),
            grid_spec=pltpu.PrefetchScalarGridSpec(
                num_scalar_prefetch=1,
                grid=grid,
                in_specs=in_specs,
                out_specs=out_specs,
                scratch_shapes=scratch_shapes,
            ),
            compiler_params=pltpu.CompilerParams(
                dimension_semantics=("parallel", "arbitrary"),
                vmem_limit_bytes=vmem_limit),
        )

    try:
        out = jax.block_until_ready(_build(True)(idx_arr, ws, adjs, x))
    except Exception:
        # Fallback: default (double-buffered) pipelining for x.
        out = jax.block_until_ready(_build(False)(idx_arr, ws, adjs, x))

    if Dp != D:
        out = out[:, :D]
    return out


if __name__ == "__main__":
    key = jax.random.PRNGKey(0)
    k_adj, k_x, k_ws, k_mask = jax.random.split(key, 4)

    K = 4          # number of candidate adjacency matrices
    N = 256        # number of graph nodes
    D = 128        # feature dim
    idx = 2        # selected op / adjacency

    # Deterministic "sparse" adjacency stack (dense storage, ~80% zeros).
    adjs_dense = jax.random.normal(k_adj, (K, N, N), dtype=jnp.float32)
    mask = (jax.random.uniform(k_mask, (K, N, N)) < 0.2).astype(jnp.float32)
    adjs = adjs_dense * mask

    x = jax.random.normal(k_x, (N, D), dtype=jnp.float32)
    ws = jax.random.uniform(k_ws, (K,), dtype=jnp.float32)

    # ---- full-precision path ----
    out = jax.block_until_ready(op_forward(x, adjs, ws, idx))
    ref = ws[idx] * jax.lax.dot(adjs[idx], x,
                                precision=jax.lax.Precision.HIGHEST)
    assert out.shape == (N, D)
    assert jnp.allclose(out, ref, atol=1e-3, rtol=1e-3), "mismatch (f32 path)"

    # ---- bf16-streamed adjacency path (HBM-bandwidth optimization) ----
    out_bf = jax.block_until_ready(
        op_forward(x, adjs, ws, idx, stream_dtype=jnp.bfloat16))
    ref_bf = ws[idx] * jax.lax.dot(
        adjs[idx].astype(jnp.bfloat16).astype(jnp.float32),
        x.astype(jnp.bfloat16).astype(jnp.float32),
        precision=jax.lax.Precision.HIGHEST)
    assert out_bf.shape == (N, D)
    assert jnp.allclose(out_bf, ref_bf, atol=2e-2, rtol=2e-2), \
        "mismatch (bf16 streaming path)"

    print("KERNEL_OK")
</pallas_src>

<mosaic_0001>
module attributes {stable_mosaic.version = 11 : i64} {
  func.func @_op_kernel(%arg0: i32, %arg1: i32, %arg2: memref<1xi32, #tpu.memory_space<smem>>, %arg3: memref<4xf32, #tpu.memory_space<smem>>, %arg4: memref<1x128x256xf32, #tpu.memory_space<vmem>>, %arg5: memref<256x128xf32, #tpu.memory_space<vmem>>, %arg6: memref<128x128xf32, #tpu.memory_space<vmem>>) attributes {dimension_semantics = [#tpu.dimension_semantics<parallel>, #tpu.dimension_semantics<arbitrary>], iteration_bounds = array<i64: 2, 1>, scalar_prefetch = 1 : i64, scratch_operands = 0 : i64, tpu.core_type = #tpu.core_type<tc>, window_params = [{transform_indices = @transform_0, window_bounds = array<i64: 4>}, {transform_indices = @transform_1, window_bounds = array<i64: 1, 128, 256>}, {pipeline_mode = #tpu.pipeline_mode<synchronous>, transform_indices = @transform_2, window_bounds = array<i64: 256, 128>}, {transform_indices = @transform_3, window_bounds = array<i64: 128, 128>}]} {
    %c0_i32 = arith.constant 0 : i32
    %0 = arith.cmpi eq, %arg1, %c0_i32 : i32
    %1 = arith.extui %0 : i1 to i32
    %c0_i32_0 = arith.constant 0 : i32
    %2 = arith.cmpi ne, %1, %c0_i32_0 : i32
    scf.if %2 {
      %cst_10 = arith.constant 0.000000e+00 : f32
      %16 = vector.broadcast %cst_10 : f32 to vector<128x128xf32>
      %c0_11 = arith.constant 0 : index
      %c0_12 = arith.constant 0 : index
      %17 = vector.load %arg6[%c0_11, %c0_12] : memref<128x128xf32, #tpu.memory_space<vmem>>, vector<128x128xf32>
      tpu.vector_store %arg6[%c0_11, %c0_12], %16 {strides = array<i32>} : memref<128x128xf32, #tpu.memory_space<vmem>>, vector<128x128xf32>,
    } else {
    }
    %c256_i32 = arith.constant 256 : i32
    %3 = arith.muli %arg1, %c256_i32 : i32
    %4 = tpu.assume_multiple %3, 256 : i32
    %5 = arith.index_cast %4 : i32 to index
    %c0 = arith.constant 0 : index
    %6 = vector.load %arg5[%5, %c0] : memref<256x128xf32, #tpu.memory_space<vmem>>, vector<256x128xf32>
    %c0_1 = arith.constant 0 : index
    %c0_2 = arith.constant 0 : index
    %7 = vector.load %arg6[%c0_1, %c0_2] : memref<128x128xf32, #tpu.memory_space<vmem>>, vector<128x128xf32>
    %c0_3 = arith.constant 0 : index
    %c0_4 = arith.constant 0 : index
    %c0_5 = arith.constant 0 : index
    %8 = vector.load %arg4[%c0_3, %c0_4, %c0_5] : memref<1x128x256xf32, #tpu.memory_space<vmem>>, vector<1x128x256xf32>
    %9 = vector.shape_cast %8 : vector<1x128x256xf32> to vector<128x256xf32>
    %cst = arith.constant dense<0.000000e+00> : vector<128x128xf32>
    %10 = tpu.matmul %9, %6, %cst {dimension_numbers = #tpu.dot_dimension_numbers<[1], [0], [0], [1], [0, 0, 1, 1], [], []>} : vector<128x256xf32>, vector<256x128xf32>, vector<128x128xf32> -> vector<128x128xf32>
    %11 = arith.addf %7, %10 : vector<128x128xf32>
    %c0_6 = arith.constant 0 : index
    %c0_7 = arith.constant 0 : index
    %12 = vector.load %arg6[%c0_6, %c0_7] : memref<128x128xf32, #tpu.memory_space<vmem>>, vector<128x128xf32>
    tpu.vector_store %arg6[%c0_6, %c0_7], %11 {strides = array<i32>} : memref<128x128xf32, #tpu.memory_space<vmem>>, vector<128x128xf32>,
    %c0_i32_8 = arith.constant 0 : i32
    %13 = arith.cmpi eq, %arg1, %c0_i32_8 : i32
    %14 = arith.extui %13 : i1 to i32
    %c0_i32_9 = arith.constant 0 : i32
    %15 = arith.cmpi ne, %14, %c0_i32_9 : i32
    scf.if %15 {
      %c0_10 = arith.constant 0 : index
      %16 = memref.load %arg2[%c0_10] : memref<1xi32, #tpu.memory_space<smem>>
      %17 = arith.index_cast %16 : i32 to index
      %18 = memref.load %arg3[%17] : memref<4xf32, #tpu.memory_space<smem>>
      %c0_11 = arith.constant 0 : index
      %c0_12 = arith.constant 0 : index
      %19 = vector.load %arg6[%c0_11, %c0_12] : memref<128x128xf32, #tpu.memory_space<vmem>>, vector<128x128xf32>
      %20 = vector.broadcast %18 : f32 to vector<128x128xf32>
      %21 = arith.mulf %20, %19 : vector<128x128xf32>
      %c0_13 = arith.constant 0 : index
      %c0_14 = arith.constant 0 : index
      %22 = vector.load %arg6[%c0_13, %c0_14] : memref<128x128xf32, #tpu.memory_space<vmem>>, vector<128x128xf32>
      tpu.vector_store %arg6[%c0_13, %c0_14], %21 {strides = array<i32>} : memref<128x128xf32, #tpu.memory_space<vmem>>, vector<128x128xf32>,
    } else {
    }
    return
  }
  func.func @transform_0(%arg0: i32, %arg1: i32, %arg2: memref<1xi32, #tpu.memory_space<smem>>) -> i32 {
    %c0_i32 = arith.constant 0 : i32
    %c0_i32_0 = arith.constant 0 : i32
    return %c0_i32 : i32
  }
  func.func @transform_1(%arg0: i32, %arg1: i32, %arg2: memref<1xi32, #tpu.memory_space<smem>>) -> (i32, i32, i32) {
    %c0 = arith.constant 0 : index
    %0 = memref.load %arg2[%c0] : memref<1xi32, #tpu.memory_space<smem>>
    %c0_i32 = arith.constant 0 : i32
    return %0, %arg0, %arg1 : i32, i32, i32
  }
  func.func @transform_2(%arg0: i32, %arg1: i32, %arg2: memref<1xi32, #tpu.memory_space<smem>>) -> (i32, i32) {
    %c0_i32 = arith.constant 0 : i32
    %c0_i32_0 = arith.constant 0 : i32
    %c0_i32_1 = arith.constant 0 : i32
    return %c0_i32, %c0_i32_0 : i32, i32
  }
  func.func @transform_3(%arg0: i32, %arg1: i32, %arg2: memref<1xi32, #tpu.memory_space<smem>>) -> (i32, i32) {
    %c0_i32 = arith.constant 0 : i32
    %c0_i32_0 = arith.constant 0 : i32
    return %arg0, %c0_i32 : i32, i32
  }
}

module attributes {stable_mosaic.version = 11 : i64} {
  func.func @_op_kernel(%arg0: i32, %arg1: i32, %arg2: memref<1xi32, #tpu.memory_space<smem>>, %arg3: memref<4xf32, #tpu.memory_space<smem>>, %arg4: memref<1x128x256xf32, #tpu.memory_space<vmem>>, %arg5: memref<256x128xf32, #tpu.memory_space<vmem>>, %arg6: memref<128x128xf32, #tpu.memory_space<vmem>>) attributes {dimension_semantics = [#tpu.dimension_semantics<parallel>, #tpu.dimension_semantics<arbitrary>], iteration_bounds = array<i64: 2, 1>, scalar_prefetch = 1 : i64, scratch_operands = 0 : i64, tpu.core_type = #tpu.core_type<tc>, window_params = [{transform_indices = @transform_0, window_bounds = array<i64: 4>}, {transform_indices = @transform_1, window_bounds = array<i64: 1, 128, 256>}, {pipeline_mode = #tpu.pipeline_mode<synchronous>, transform_indices = @transform_2, window_bounds = array<i64: 256, 128>}, {transform_indices = @transform_3, window_bounds = array<i64: 128, 128>}]} {
    %c0_i32 = arith.constant 0 : i32
    %0 = arith.cmpi eq, %arg1, %c0_i32 : i32
    %1 = arith.extui %0 : i1 to i32
    %c0_i32_0 = arith.constant 0 : i32
    %2 = arith.cmpi ne, %1, %c0_i32_0 : i32
    scf.if %2 {
      %cst_10 = arith.constant 0.000000e+00 : f32
      %16 = vector.broadcast %cst_10 : f32 to vector<128x128xf32>
      %c0_11 = arith.constant 0 : index
      %c0_12 = arith.constant 0 : index
      %17 = vector.load %arg6[%c0_11, %c0_12] : memref<128x128xf32, #tpu.memory_space<vmem>>, vector<128x128xf32>
      tpu.vector_store %arg6[%c0_11, %c0_12], %16 {strides = array<i32>} : memref<128x128xf32, #tpu.memory_space<vmem>>, vector<128x128xf32>,
    } else {
    }
    %c256_i32 = arith.constant 256 : i32
    %3 = arith.muli %arg1, %c256_i32 : i32
    %4 = tpu.assume_multiple %3, 256 : i32
    %5 = arith.index_cast %4 : i32 to index
    %c0 = arith.constant 0 : index
    %6 = vector.load %arg5[%5, %c0] : memref<256x128xf32, #tpu.memory_space<vmem>>, vector<256x128xf32>
    %c0_1 = arith.constant 0 : index
    %c0_2 = arith.constant 0 : index
    %7 = vector.load %arg6[%c0_1, %c0_2] : memref<128x128xf32, #tpu.memory_space<vmem>>, vector<128x128xf32>
    %c0_3 = arith.constant 0 : index
    %c0_4 = arith.constant 0 : index
    %c0_5 = arith.constant 0 : index
    %8 = vector.load %arg4[%c0_3, %c0_4, %c0_5] : memref<1x128x256xf32, #tpu.memory_space<vmem>>, vector<1x128x256xf32>
    %9 = vector.shape_cast %8 : vector<1x128x256xf32> to vector<128x256xf32>
    %cst = arith.constant dense<0.000000e+00> : vector<128x128xf32>
    %10 = tpu.matmul %9, %6, %cst {dimension_numbers = #tpu.dot_dimension_numbers<[1], [0], [0], [1], [0, 0, 1, 1], [], []>} : vector<128x256xf32>, vector<256x128xf32>, vector<128x128xf32> -> vector<128x128xf32>
    %11 = arith.addf %7, %10 : vector<128x128xf32>
    %c0_6 = arith.constant 0 : index
    %c0_7 = arith.constant 0 : index
    %12 = vector.load %arg6[%c0_6, %c0_7] : memref<128x128xf32, #tpu.memory_space<vmem>>, vector<128x128xf32>
    tpu.vector_store %arg6[%c0_6, %c0_7], %11 {strides = array<i32>} : memref<128x128xf32, #tpu.memory_space<vmem>>, vector<128x128xf32>,
    %c0_i32_8 = arith.constant 0 : i32
    %13 = arith.cmpi eq, %arg1, %c0_i32_8 : i32
    %14 = arith.extui %13 : i1 to i32
    %c0_i32_9 = arith.constant 0 : i32
    %15 = arith.cmpi ne, %14, %c0_i32_9 : i32
    scf.if %15 {
      %c0_10 = arith.constant 0 : index
      %16 = memref.load %arg2[%c0_10] : memref<1xi32, #tpu.memory_space<smem>>
      %17 = arith.index_cast %16 : i32 to index
      %18 = memref.load %arg3[%17] : memref<4xf32, #tpu.memory_space<smem>>
      %c0_11 = arith.constant 0 : index
      %c0_12 = arith.constant 0 : index
      %19 = vector.load %arg6[%c0_11, %c0_12] : memref<128x128xf32, #tpu.memory_space<vmem>>, vector<128x128xf32>
      %20 = vector.broadcast %18 : f32 to vector<128x128xf32>
      %21 = arith.mulf %20, %19 : vector<128x128xf32>
      %c0_13 = arith.constant 0 : index
      %c0_14 = arith.constant 0 : index
      %22 = vector.load %arg6[%c0_13, %c0_14] : memref<128x128xf32, #tpu.memory_space<vmem>>, vector<128x128xf32>
      tpu.vector_store %arg6[%c0_13, %c0_14], %21 {strides = array<i32>} : memref<128x128xf32, #tpu.memory_space<vmem>>, vector<128x128xf32>,
    } else {
    }
    return
  }
  func.func @transform_0(%arg0: i32, %arg1: i32, %arg2: memref<1xi32, #tpu.memory_space<smem>>) -> i32 {
    %c0_i32 = arith.constant 0 : i32
    %c0_i32_0 = arith.constant 0 : i32
    return %c0_i32 : i32
  }
  func.func @transform_1(%arg0: i32, %arg1: i32, %arg2: memref<1xi32, #tpu.memory_space<smem>>) -> (i32, i32, i32) {
    %c0 = arith.constant 0 : index
    %0 = memref.load %arg2[%c0] : memref<1xi32, #tpu.memory_space<smem>>
    %c0_i32 = arith.constant 0 : i32
    return %0, %arg0, %arg1 : i32, i32, i32
  }
  func.func @transform_2(%arg0: i32, %arg1: i32, %arg2: memref<1xi32, #tpu.memory_space<smem>>) -> (i32, i32) {
    %c0_i32 = arith.constant 0 : i32
    %c0_i32_0 = arith.constant 0 : i32
    %c0_i32_1 = arith.constant 0 : i32
    return %c0_i32, %c0_i32_0 : i32, i32
  }
  func.func @transform_3(%arg0: i32, %arg1: i32, %arg2: memref<1xi32, #tpu.memory_space<smem>>) -> (i32, i32) {
    %c0_i32 = arith.constant 0 : i32
    %c0_i32_0 = arith.constant 0 : i32
    return %arg0, %c0_i32 : i32, i32
  }
}

</mosaic_0001>

<llo_original>
// kernel: tpu_custom_call.1
$region0: #{tpu_custom_call.1}
  #allocation0 [shape = 'u32[]', space=smem, size = 0x4, offset = 0x4, fixed_abs, tag = 'smem constant byte address 0x4 - core index']
  #allocation1 [shape = 'u32[144,128]{1,0:T(1,128)}', space=vmem, size = 0x12000, scoped, tag = 'internal scratch']
  #allocation2 [shape = 's32[1]{0}', space=sflag, size = 0x4, scoped, tag = 'scoped memory for tpu_custom_call.1']
  #allocation3 [shape = 's32[1]{0:T(128)S(6)}', space=smem, size = 0x200, scoped, tag = 'prefetched SMEM operand 0']
  %s0 = inlined_call_operand.<no memory space> [shape: s32[1], index: 0, kind: input, shape index: {}]
  %s1 = inlined_call_operand.vmem [shape: f32[4], index: 1, kind: input, shape index: {}]
  %s2 = inlined_call_operand.hbm [shape: f32[4,256,256], index: 2, kind: input, shape index: {}]
  %s3 = inlined_call_operand.hbm [shape: f32[256,128], index: 3, kind: input, shape index: {}]
  %s4 = inlined_call_operand.hbm [shape: f32[256,128], index: 4, kind: output, shape index: {}]
  %s5 = sld [smem:[#allocation0]]
  $region65: #{tpu_custom_call.1} parent=0
    _
  %s7 = ssub.s32 1, %s5
  %s8 = scalar_select 0, %s7, %s5
  %9 = sst [smem:[#allocation3]] %s0
  $region1: #{tpu_custom_call.1} parent=0
    #allocation4 [shape = 'u8[512]{0}', space=smem, size = 0x200, scoped, tag = 'input window, operand 1, single buffered']
    #allocation5 [shape = 's32[2]{0}', space=sflag, size = 0x8, scoped, tag = 'scoped memory for tpu_custom_call.1']
    #allocation6 [shape = 's32[2]{0}', space=sflag, size = 0x8, scoped, tag = 'scoped memory for tpu_custom_call.1']
    #allocation7 [shape = 's32[2]{0}', space=sflag, size = 0x8, scoped, tag = 'scoped memory for tpu_custom_call.1']
    #allocation8 [shape = 'u8[262144]{0}', space=vmem, size = 0x40000, scoped, tag = 'input window, operand 2']
    #allocation9 [shape = 'u8[131072]{0}', space=vmem, size = 0x20000, scoped, tag = 'input window, operand 3, single buffered']
    #allocation10 [shape = 's32[1]{0}', space=sflag, size = 0x4, scoped, tag = 'scoped memory for tpu_custom_call.1']
    #allocation11 [shape = 'u8[131072]{0}', space=vmem, size = 0x20000, scoped, tag = 'output window, operand 0']
    %10 = vsyncpa [#allocation7], 0
    %11 = vsyncpa [#allocation5], 0
    %s12 = scalar_lea.sflag [#allocation5], 1
    %13 = vsyncpa %s12, 0
    %14 = vsyncpa [#allocation10], 0
    %15 = vsyncpa [#allocation6], 0
    %s16 = scalar_lea.sflag [#allocation6], 1
    %17 = vsyncpa %s16, 0
    loop: start=0, step=1, limit=4
    $region2: #{tpu_custom_call.1} parent=1 // loop_pre_header
      _
    $region3: #{tpu_custom_call.1} parent=1 // loop_header
      %s19 = sphi 0, %s23
      %p20 = scmp.ge.s32.totalorder %s19, 4
      %s26 = sphi 0, %s38
      %s27 = sphi 0, %s34
      %s28 = sphi 0, %s26
      %s29 = sphi 0, %s27
      %s30 = sphi 0, %s28
      %s31 = sphi 0, %s29
      %s39 = sphi 0, %s39
      %s41 = sphi 0, %s39
      %s42 = sphi 0, %s41
      %s56 = sphi 0, %s42
      %s68 = sphi 0, %s70
      %s71 = sphi 0, %s68
      %s72 = sphi 0, %s71
      %s88 = sphi 0, %s72
      %s92 = sphi 0, %s92
      %s94 = sphi 0, %s92
      %s95 = sphi 0, %s94
      %s109 = sphi 0, %s95
      %s115 = sphi 0, %s117
      %s118 = sphi 0, %s115
      %s119 = sphi 0, %s118
      %s135 = sphi 0, %s119
    $region4: #{tpu_custom_call.1} parent=1 // loop_header_branch
      %22 = sbr.rel (%p20) target = $region8
    $region5: #{tpu_custom_call.1} parent=1 // loop_body
      %s24 = ssub.s32 %s19, 1
      %s25 = ssub.s32 %s19, 2
      %s32 = sadd.s32 1, %s27
      %p33 = scmp.ge.s32.totalorder %s32, 1
      %s34 = scalar_select %p33, 0, %s32
      %s35 = sadd.s32 1, %s26
      %s36 = scalar_select %p33, %s35, %s26
      %p37 = scmp.ge.s32.totalorder %s36, 2
      %s38 = scalar_select %p37, 0, %s36
      %s40 = sadd.s32 %s39, 1
      %p43 = scmp.eq.s32.totalorder %s19, 1
      %p44 = scmp.ne.s32.totalorder %s39, %s41
      %p45 = scmp.eq.s32.totalorder %s19, 0
      %p46 = por %p44, %p45
      %p47 = scmp.ne.s32.totalorder %s39, %s41
      %p48 = scmp.eq.s32.totalorder %s24, 1
      %p49 = por %p47, %p48
      %p50 = scmp.ne.s32.totalorder %s41, %s42
      %p51 = scmp.eq.s32.totalorder %s24, 0
      %p52 = por %p50, %p51
      %p53 = scmp.ne.s32.totalorder %s41, %s42
      %p54 = scmp.eq.s32.totalorder %s25, 1
      %p55 = por %p53, %p54
      %p57 = scmp.ne.s32.totalorder %s42, %s56
      %p58 = scmp.eq.s32.totalorder %s25, 0
      %p59 = por %p57, %p58
      %s60 = sld [smem:[#allocation3]]
      %s61 = sld [smem:[#allocation3]]
      %s62 = ssub.s32 %s60, %s61
      %s63 = ssub.s32 %s26, %s38
      %s64 = sor.u32 %s62, %s63
      %s65 = ssub.s32 %s27, %s34
      %s66 = sor.u32 %s64, %s65
      %p67 = scmp.eq.s32.totalorder %s66, 0
      %s69 = sadd.s32 %s68, 1
      %s70 = scalar_select %p67, %s68, %s69
      %p73 = pneg %p67
      %p74 = scmp.eq.s32.totalorder %s19, 1
      %p75 = por %p73, %p74
      %p76 = scmp.ne.s32.totalorder %s68, %s71
      %p77 = scmp.eq.s32.totalorder %s19, 0
      %p78 = por %p76, %p77
      %p79 = scmp.ne.s32.totalorder %s68, %s71
      %p80 = scmp.eq.s32.totalorder %s24, 1
      %p81 = por %p79, %p80
      %p82 = scmp.ne.s32.totalorder %s71, %s72
      %p83 = scmp.eq.s32.totalorder %s24, 0
      %p84 = por %p82, %p83
      %p85 = scmp.ne.s32.totalorder %s71, %s72
      %p86 = scmp.eq.s32.totalorder %s25, 1
      %p87 = por %p85, %p86
      %p89 = scmp.ne.s32.totalorder %s72, %s88
      %p90 = scmp.eq.s32.totalorder %s25, 0
      %p91 = por %p89, %p90
      %s93 = sadd.s32 %s92, 1
      %p96 = scmp.eq.s32.totalorder %s19, 1
      %p97 = scmp.ne.s32.totalorder %s92, %s94
      %p98 = scmp.eq.s32.totalorder %s19, 0
      %p99 = por %p97, %p98
      %p100 = scmp.ne.s32.totalorder %s92, %s94
      %p101 = scmp.eq.s32.totalorder %s24, 1
      %p102 = por %p100, %p101
      %p103 = scmp.ne.s32.totalorder %s94, %s95
      %p104 = scmp.eq.s32.totalorder %s24, 0
      %p105 = por %p103, %p104
      %p106 = scmp.ne.s32.totalorder %s94, %s95
      %p107 = scmp.eq.s32.totalorder %s25, 1
      %p108 = por %p106, %p107
      %p110 = scmp.ne.s32.totalorder %s95, %s109
      %p111 = scmp.eq.s32.totalorder %s25, 0
      %p112 = por %p110, %p111
      %s113 = ssub.s32 %s26, %s38
      %p114 = scmp.eq.s32.totalorder %s113, 0
      %s116 = sadd.s32 %s115, 1
      %s117 = scalar_select %p114, %s115, %s116
      %p120 = pneg %p114
      %p121 = scmp.eq.s32.totalorder %s19, 1
      %p122 = por %p120, %p121
      %p123 = scmp.ne.s32.totalorder %s115, %s118
      %p124 = scmp.eq.s32.totalorder %s19, 0
      %p125 = por %p123, %p124
      %p126 = scmp.ne.s32.totalorder %s115, %s118
      %p127 = scmp.eq.s32.totalorder %s24, 1
      %p128 = por %p126, %p127
      %p129 = scmp.ne.s32.totalorder %s118, %s119
      %p130 = scmp.eq.s32.totalorder %s24, 0
      %p131 = por %p129, %p130
      %p132 = scmp.ne.s32.totalorder %s118, %s119
      %p133 = scmp.eq.s32.totalorder %s25, 1
      %p134 = por %p132, %p133
      %p136 = scmp.ne.s32.totalorder %s119, %s135
      %p137 = scmp.eq.s32.totalorder %s25, 0
      %p138 = por %p136, %p137
      %p139 = scmp.le.s32.totalorder 1, %s19
      %p140 = scmp.lt.s32.totalorder %s19, 3
      %p141 = pnand %p139, %p140
      %p142 = pneg %p141
      // Predicated region
      $region9: #{tpu_custom_call.1} parent=5 // pred_check
        _
      $region10: #{tpu_custom_call.1} parent=5 // pred_check_branch
        %144 = sbr.rel (%p141) target = $region12
      $region11: #{tpu_custom_call.1} parent=5 // pred_region
        %s145 = ssub.s32 %s19, 1
        // Predicated region
        $region13: #{tpu_custom_call.1} parent=11 // pred_check
          %p146 = pneg %p52
        $region14: #{tpu_custom_call.1} parent=11 // pred_check_branch
          %148 = sbr.rel (%p146) target = $region16
        $region15: #{tpu_custom_call.1} parent=11 // pred_region
          %s150 = ssub.s32 16, 16
          %151 = vsyncadd [#allocation7], %s150
          %s153 = sshll.u32 %s1, 4
          %s154 = int_to_ptr.vmem [resolvable:$true] %s153
          %156 = dma.vmem_to_smem %s154, 16, [#allocation4], [#allocation7]
        $region16: #{tpu_custom_call.1} parent=11 // pred_fallthru
          _
        // Predicated region
        $region17: #{tpu_custom_call.1} parent=11 // pred_check
          %p157 = pneg %p105
        $region18: #{tpu_custom_call.1} parent=11 // pred_check_branch
          %159 = sbr.rel (%p157) target = $region20
        $region19: #{tpu_custom_call.1} parent=11 // pred_region
          %s161 = ssub.s32 4096, 4096
          %162 = vsyncadd [#allocation10], %s161
          %s163 = sshll.u32 [#allocation9], 4
          %s164 = int_to_ptr.vmem [resolvable:$true] %s163
          %169 = dma.hbm_to_vmem [thread:$0]  %s3, 4096, %s164, [#allocation10], 128, 128, 8
        $region20: #{tpu_custom_call.1} parent=11 // pred_fallthru
          _
      $region12: #{tpu_custom_call.1} parent=5 // pred_fallthru
        _
      %p170 = scmp.lt.s32.totalorder %s19, 2
      // Predicated region
      $region21: #{tpu_custom_call.1} parent=5 // pred_check
        %p171 = pneg %p170
      $region22: #{tpu_custom_call.1} parent=5 // pred_check_branch
        %173 = sbr.rel (%p171) target = $region24
      $region23: #{tpu_custom_call.1} parent=5 // pred_region
        // Predicated region
        $region25: #{tpu_custom_call.1} parent=23 // pred_check
          %p174 = pneg %p78
        $region26: #{tpu_custom_call.1} parent=23 // pred_check_branch
          %176 = sbr.rel (%p174) target = $region28
        $region27: #{tpu_custom_call.1} parent=23 // pred_region
          %s177 = sand.u32 %s68, 1
          %s178 = scalar_lea.sflag [#allocation5], %s177
          %s179 = sand.u32 %s68, 1
          %s180 = smul.addr %s179, 256
          %s181 = scalar_lea.vmem [#allocation8], %s180
          %s182 = sld [smem:[#allocation3]]
          %s183 = smul.u32 16, %s26
          %s184 = smul.u32 2, %s27
          %s186 = ssub.s32 4096, 4096
          %187 = vsyncadd %s178, %s186
          %s188 = smul.addr %s183, 2
          %s189 = sadd.s32 %s184, %s188
          %s190 = smul.addr %s182, 64
          %s191 = sadd.s32 %s189, %s190
          %s192 = smul.addr %s191, 128
          %s193 = scalar_lea.hbm %s2, %s192
          %s194 = sshll.u32 %s181, 4
          %s195 = int_to_ptr.vmem [resolvable:$true] %s194
          %200 = dma.hbm_to_vmem [thread:$0]  %s193, 4096, %s195, %s178, 256, 256, 16
        $region28: #{tpu_custom_call.1} parent=23 // pred_fallthru
          _
      $region24: #{tpu_custom_call.1} parent=5 // pred_fallthru
        _
      %p201 = scmp.le.s32.totalorder 1, %s19
      %p202 = scmp.lt.s32.totalorder %s19, 3
      %p203 = pnand %p201, %p202
      %p204 = pneg %p203
      // Predicated region
      $region29: #{tpu_custom_call.1} parent=5 // pred_check
        _
      $region30: #{tpu_custom_call.1} parent=5 // pred_check_branch
        %206 = sbr.rel (%p203) target = $region32
      $region31: #{tpu_custom_call.1} parent=5 // pred_region
        %s207 = ssub.s32 %s19, 1
        // Predicated region
        $region33: #{tpu_custom_call.1} parent=31 // pred_check
          %p208 = pneg %p52
        $region34: #{tpu_custom_call.1} parent=31 // pred_check_branch
          %210 = sbr.rel (%p208) target = $region36
        $region35: #{tpu_custom_call.1} parent=31 // pred_region
          %211 = dma.done [#allocation7], 16
        $region36: #{tpu_custom_call.1} parent=31 // pred_fallthru
          _
        %s212 = sand.u32 %s71, 1
        %s213 = scalar_lea.sflag [#allocation5], %s212
        %s214 = sand.u32 %s71, 1
        %s215 = smul.addr %s214, 256
        %s216 = scalar_lea.vmem [#allocation8], %s215
        // Predicated region
        $region37: #{tpu_custom_call.1} parent=31 // pred_check
          %p217 = pneg %p84
        $region38: #{tpu_custom_call.1} parent=31 // pred_check_branch
          %219 = sbr.rel (%p217) target = $region40
        $region39: #{tpu_custom_call.1} parent=31 // pred_region
          %220 = dma.done %s213, 4096
        $region40: #{tpu_custom_call.1} parent=31 // pred_fallthru
          _
        // Predicated region
        $region41: #{tpu_custom_call.1} parent=31 // pred_check
          %p221 = pneg %p105
        $region42: #{tpu_custom_call.1} parent=31 // pred_check_branch
          %223 = sbr.rel (%p221) target = $region44
        $region43: #{tpu_custom_call.1} parent=31 // pred_region
          %224 = dma.done [#allocation10], 4096
        $region44: #{tpu_custom_call.1} parent=31 // pred_fallthru
          _
        %225 = sfence
        %p226 = pneg %p52
        %p227 = pneg %p49
        %s228 = sand.u32 %s71, 1
        %s229 = scalar_lea.sflag [#allocation5], %s228
        %s230 = sand.u32 %s71, 1
        %s231 = smul.addr %s230, 256
        %s232 = scalar_lea.vmem [#allocation8], %s231
        %p233 = pneg %p84
        %p234 = pneg %p81
        %p235 = pneg %p105
        %p236 = pneg %p102
        %p237 = pneg %p131
        %p238 = pneg %p128
        %s239 = sand.u32 %s118, 1
        %s240 = scalar_lea.sflag [#allocation6], %s239
        %s241 = sand.u32 %s118, 1
        %s242 = smul.addr %s241, 128
        %s243 = scalar_lea.vmem [#allocation11], %s242
        %s244 = sld [smem:[#allocation3]]
        %s245 = smul.u32 16, %s28
        %s246 = smul.u32 2, %s29
        %s247 = smul.u32 16, %s28
        %p248 = scmp.eq.s32.totalorder %s29, 0
        // Predicated region
        $region45: #{tpu_custom_call.1} parent=31 // pred_check
          %p249 = pneg %p248
        $region46: #{tpu_custom_call.1} parent=31 // pred_check_branch
          %251 = sbr.rel (%p249) target = $region48
        $region47: #{tpu_custom_call.1} parent=31 // pred_region
          %252 = vst [vmem:[%s243] sm:$0xff] 0.0
          %253 = vst [vmem:[%s243 + $0x8] sm:$0xff] 0.0
          %254 = vst [vmem:[%s243 + $0x10] sm:$0xff] 0.0
          %255 = vst [vmem:[%s243 + $0x18] sm:$0xff] 0.0
          %256 = vst [vmem:[%s243 + $0x20] sm:$0xff] 0.0
          %257 = vst [vmem:[%s243 + $0x28] sm:$0xff] 0.0
          %258 = vst [vmem:[%s243 + $0x30] sm:$0xff] 0.0
          %259 = vst [vmem:[%s243 + $0x38] sm:$0xff] 0.0
          %260 = vst [vmem:[%s243 + $0x40] sm:$0xff] 0.0
          %261 = vst [vmem:[%s243 + $0x48] sm:$0xff] 0.0
          %262 = vst [vmem:[%s243 + $0x50] sm:$0xff] 0.0
          %263 = vst [vmem:[%s243 + $0x58] sm:$0xff] 0.0
          %264 = vst [vmem:[%s243 + $0x60] sm:$0xff] 0.0
          %265 = vst [vmem:[%s243 + $0x68] sm:$0xff] 0.0
          %266 = vst [vmem:[%s243 + $0x70] sm:$0xff] 0.0
          %267 = vst [vmem:[%s243 + $0x78] sm:$0xff] 0.0
        $region48: #{tpu_custom_call.1} parent=31 // pred_fallthru
          _
        %s268 = smul.u32 %s29, 256
        %s269 = scalar_lea.vmem [#allocation9], %s268
        %v270 = vld [vmem:[%s269] sm:$0xff]
        %v271 = vld [vmem:[%s269 + $0x8] sm:$0xff]
        %v272 = vld [vmem:[%s269 + $0x10] sm:$0xff]
        %v273 = vld [vmem:[%s269 + $0x18] sm:$0xff]
        %v274 = vld [vmem:[%s269 + $0x20] sm:$0xff]
        %v275 = vld [vmem:[%s269 + $0x28] sm:$0xff]
        %v276 = vld [vmem:[%s269 + $0x30] sm:$0xff]
        %v277 = vld [vmem:[%s269 + $0x38] sm:$0xff]
        %v278 = vld [vmem:[%s269 + $0x40] sm:$0xff]
        %v279 = vld [vmem:[%s269 + $0x48] sm:$0xff]
        %v280 = vld [vmem:[%s269 + $0x50] sm:$0xff]
        %v281 = vld [vmem:[%s269 + $0x58] sm:$0xff]
        %v282 = vld [vmem:[%s269 + $0x60] sm:$0xff]
        %v283 = vld [vmem:[%s269 + $0x68] sm:$0xff]
        %v284 = vld [vmem:[%s269 + $0x70] sm:$0xff]
        %v285 = vld [vmem:[%s269 + $0x78] sm:$0xff]
        %v286 = vld [vmem:[%s269 + $0x80] sm:$0xff]
        %v287 = vld [vmem:[%s269 + $0x88] sm:$0xff]
        %v288 = vld [vmem:[%s269 + $0x90] sm:$0xff]
        %v289 = vld [vmem:[%s269 + $0x98] sm:$0xff]
        %v290 = vld [vmem:[%s269 + $0xa0] sm:$0xff]
        %v291 = vld [vmem:[%s269 + $0xa8] sm:$0xff]
        %v292 = vld [vmem:[%s269 + $0xb0] sm:$0xff]
        %v293 = vld [vmem:[%s269 + $0xb8] sm:$0xff]
        %v294 = vld [vmem:[%s269 + $0xc0] sm:$0xff]
        %v295 = vld [vmem:[%s269 + $0xc8] sm:$0xff]
        %v296 = vld [vmem:[%s269 + $0xd0] sm:$0xff]
        %v297 = vld [vmem:[%s269 + $0xd8] sm:$0xff]
        %v298 = vld [vmem:[%s269 + $0xe0] sm:$0xff]
        %v299 = vld [vmem:[%s269 + $0xe8] sm:$0xff]
        %v300 = vld [vmem:[%s269 + $0xf0] sm:$0xff]
        %v301 = vld [vmem:[%s269 + $0xf8] sm:$0xff]
        %v302 = vld [vmem:[%s243] sm:$0xff]
        %v303 = vld [vmem:[%s243 + $0x8] sm:$0xff]
        %v304 = vld [vmem:[%s243 + $0x10] sm:$0xff]
        %v305 = vld [vmem:[%s243 + $0x18] sm:$0xff]
        %v306 = vld [vmem:[%s243 + $0x20] sm:$0xff]
        %v307 = vld [vmem:[%s243 + $0x28] sm:$0xff]
        %v308 = vld [vmem:[%s243 + $0x30] sm:$0xff]
        %v309 = vld [vmem:[%s243 + $0x38] sm:$0xff]
        %v310 = vld [vmem:[%s243 + $0x40] sm:$0xff]
        %v311 = vld [vmem:[%s243 + $0x48] sm:$0xff]
        %v312 = vld [vmem:[%s243 + $0x50] sm:$0xff]
        %v313 = vld [vmem:[%s243 + $0x58] sm:$0xff]
        %v314 = vld [vmem:[%s243 + $0x60] sm:$0xff]
        %v315 = vld [vmem:[%s243 + $0x68] sm:$0xff]
        %v316 = vld [vmem:[%s243 + $0x70] sm:$0xff]
        %v317 = vld [vmem:[%s243 + $0x78] sm:$0xff]
        %v318 = vld [vmem:[%s216] sm:$0xff]
        %v319 = vld [vmem:[%s216 + $0x8] sm:$0xff]
        %v320 = vld [vmem:[%s216 + $0x10] sm:$0xff]
        %v321 = vld [vmem:[%s216 + $0x18] sm:$0xff]
        %v322 = vld [vmem:[%s216 + $0x20] sm:$0xff]
        %v323 = vld [vmem:[%s216 + $0x28] sm:$0xff]
        %v324 = vld [vmem:[%s216 + $0x30] sm:$0xff]
        %v325 = vld [vmem:[%s216 + $0x38] sm:$0xff]
        %v326 = vld [vmem:[%s216 + $0x40] sm:$0xff]
        %v327 = vld [vmem:[%s216 + $0x48] sm:$0xff]
        %v328 = vld [vmem:[%s216 + $0x50] sm:$0xff]
        %v329 = vld [vmem:[%s216 + $0x58] sm:$0xff]
        %v330 = vld [vmem:[%s216 + $0x60] sm:$0xff]
        %v331 = vld [vmem:[%s216 + $0x68] sm:$0xff]
        %v332 = vld [vmem:[%s216 + $0x70] sm:$0xff]
        %v333 = vld [vmem:[%s216 + $0x78] sm:$0xff]
        %v334 = vld [vmem:[%s216 + $0x80] sm:$0xff]
        %v335 = vld [vmem:[%s216 + $0x88] sm:$0xff]
        %v336 = vld [vmem:[%s216 + $0x90] sm:$0xff]
        %v337 = vld [vmem:[%s216 + $0x98] sm:$0xff]
        %v338 = vld [vmem:[%s216 + $0xa0] sm:$0xff]
        %v339 = vld [vmem:[%s216 + $0xa8] sm:$0xff]
        %v340 = vld [vmem:[%s216 + $0xb0] sm:$0xff]
        %v341 = vld [vmem:[%s216 + $0xb8] sm:$0xff]
        %v342 = vld [vmem:[%s216 + $0xc0] sm:$0xff]
        %v343 = vld [vmem:[%s216 + $0xc8] sm:$0xff]
        %v344 = vld [vmem:[%s216 + $0xd0] sm:$0xff]
        %v345 = vld [vmem:[%s216 + $0xd8] sm:$0xff]
        %v346 = vld [vmem:[%s216 + $0xe0] sm:$0xff]
        %v347 = vld [vmem:[%s216 + $0xe8] sm:$0xff]
        %v348 = vld [vmem:[%s216 + $0xf0] sm:$0xff]
        %v349 = vld [vmem:[%s216 + $0xf8] sm:$0xff]
        %350 = vmatprep.subr.mxu0 0.0
        %351 = vmatpush1.msra.mxu0 %v270
        %352 = vmatprep.subr.mxu0 0.0
        %353 = vmatpush1.msra.mxu0 %v271
        %354 = vmatprep.subr.mxu0 0.0
        %355 = vmatpush1.msra.mxu0 %v272
        %356 = vmatprep.subr.mxu0 0.0
        %357 = vmatpush1.msra.mxu0 %v273
        %358 = vmatprep.subr.mxu0 0.0
        %359 = vmatpush1.msra.mxu0 %v274
        %360 = vmatprep.subr.mxu0 0.0
        %361 = vmatpush1.msra.mxu0 %v275
        %362 = vmatprep.subr.mxu0 0.0
        %363 = vmatpush1.msra.mxu0 %v276
        %364 = vmatprep.subr.mxu0 0.0
        %365 = vmatpush1.msra.mxu0 %v277
        %366 = vmatprep.subr.mxu0 0.0
        %367 = vmatpush1.msra.mxu0 %v278
        %368 = vmatprep.subr.mxu0 0.0
        %369 = vmatpush1.msra.mxu0 %v279
        %370 = vmatprep.subr.mxu0 0.0
        %371 = vmatpush1.msra.mxu0 %v280
        %372 = vmatprep.subr.mxu0 0.0
        %373 = vmatpush1.msra.mxu0 %v281
        %374 = vmatprep.subr.mxu0 0.0
        %375 = vmatpush1.msra.mxu0 %v282
        %376 = vmatprep.subr.mxu0 0.0
        %377 = vmatpush1.msra.mxu0 %v283
        %378 = vmatprep.subr.mxu0 0.0
        %379 = vmatpush1.msra.mxu0 %v284
        %380 = vmatprep.subr.mxu0 0.0
        %381 = vmatpush1.msra.mxu0 %v285
        %382 = vmatprep.subr.mxu0 0.0
        %383 = vmatpush1.msra.mxu0 %v286
        %384 = vmatprep.subr.mxu0 0.0
        %385 = vmatpush1.msra.mxu0 %v287
        %386 = vmatprep.subr.mxu0 0.0
        %387 = vmatpush1.msra.mxu0 %v288
        %388 = vmatprep.subr.mxu0 0.0
        %389 = vmatpush1.msra.mxu0 %v289
        %390 = vmatprep.subr.mxu0 0.0
        %391 = vmatpush1.msra.mxu0 %v290
        %392 = vmatprep.subr.mxu0 0.0
        %393 = vmatpush1.msra.mxu0 %v291
        %394 = vmatprep.subr.mxu0 0.0
        %395 = vmatpush1.msra.mxu0 %v292
        %396 = vmatprep.subr.mxu0 0.0
        %397 = vmatpush1.msra.mxu0 %v293
        %398 = vmatprep.subr.mxu0 0.0
        %399 = vmatpush1.msra.mxu0 %v294
        %400 = vmatprep.subr.mxu0 0.0
        %401 = vmatpush1.msra.mxu0 %v295
        %402 = vmatprep.subr.mxu0 0.0
        %403 = vmatpush1.msra.mxu0 %v296
        %404 = vmatprep.subr.mxu0 0.0
        %405 = vmatpush1.msra.mxu0 %v297
        %406 = vmatprep.subr.mxu0 0.0
        %407 = vmatpush1.msra.mxu0 %v298
        %408 = vmatprep.subr.mxu0 0.0
        %409 = vmatpush1.msra.mxu0 %v299
        %410 = vmatprep.subr.mxu0 0.0
        %411 = vmatpush1.msra.mxu0 %v300
        %412 = vmatprep.subr.mxu0 0.0
        %413 = vmatpush1.msra.mxu0 %v301
        %414 = vmatprep.mubr.f32.mxu0 %v319
        %415 = vmatmul.mubr.f32.gmra.mrb[0].mxu0 %v318
        %v416 = vpop.f32.mrb[0].mxu0
        %v417 = vadd.f32 0.0, %v416
        %v418 = vpop.f32.mrb[0].mxu0
        %419 = vmatprep.mubr.f32.mxu0 %v321
        %420 = vmatmul.mubr.f32.gmra.mrb[0].mxu0 %v320
        %v421 = vpop.f32.mrb[0].mxu0
        %v422 = vadd.f32 0.0, %v421
        %v423 = vpop.f32.mrb[0].mxu0
        %424 = vmatprep.mubr.f32.mxu0 %v323
        %425 = vmatmul.mubr.f32.gmra.mrb[0].mxu0 %v322
        %v426 = vpop.f32.mrb[0].mxu0
        %v427 = vadd.f32 0.0, %v426
        %v428 = vpop.f32.mrb[0].mxu0
        %429 = vmatprep.mubr.f32.mxu0 %v325
        %430 = vmatmul.mubr.f32.gmra.mrb[0].mxu0 %v324
        %v431 = vpop.f32.mrb[0].mxu0
        %v432 = vadd.f32 0.0, %v431
        %v433 = vpop.f32.mrb[0].mxu0
        %434 = vmatprep.mubr.f32.mxu0 %v327
        %435 = vmatmul.mubr.f32.gmra.mrb[0].mxu0 %v326
        %v436 = vpop.f32.mrb[0].mxu0
        %v437 = vadd.f32 0.0, %v436
        %v438 = vpop.f32.mrb[0].mxu0
        %439 = vmatprep.mubr.f32.mxu0 %v329
        %440 = vmatmul.mubr.f32.gmra.mrb[0].mxu0 %v328
        %v441 = vpop.f32.mrb[0].mxu0
        %v442 = vadd.f32 0.0, %v441
        %v443 = vpop.f32.mrb[0].mxu0
        %444 = vmatprep.mubr.f32.mxu0 %v331
        %445 = vmatmul.mubr.f32.gmra.mrb[0].mxu0 %v330
        %v446 = vpop.f32.mrb[0].mxu0
        %v447 = vadd.f32 0.0, %v446
        %v448 = vpop.f32.mrb[0].mxu0
        %449 = vmatprep.mubr.f32.mxu0 %v333
        %450 = vmatmul.mubr.f32.gmra.mrb[0].mxu0 %v332
        %v451 = vpop.f32.mrb[0].mxu0
        %v452 = vadd.f32 0.0, %v451
        %v453 = vpop.f32.mrb[0].mxu0
        %454 = vmatprep.mubr.f32.mxu0 %v335
        %455 = vmatmul.mubr.f32.gmra.mrb[0].mxu0 %v334
        %v456 = vpop.f32.mrb[0].mxu0
        %v457 = vadd.f32 0.0, %v456
        %v458 = vpop.f32.mrb[0].mxu0
        %459 = vmatprep.mubr.f32.mxu0 %v337
        %460 = vmatmul.mubr.f32.gmra.mrb[0].mxu0 %v336
        %v461 = vpop.f32.mrb[0].mxu0
        %v462 = vadd.f32 0.0, %v461
        %v463 = vpop.f32.mrb[0].mxu0
        %464 = vmatprep.mubr.f32.mxu0 %v339
        %465 = vmatmul.mubr.f32.gmra.mrb[0].mxu0 %v338
        %v466 = vpop.f32.mrb[0].mxu0
        %v467 = vadd.f32 0.0, %v466
        %v468 = vpop.f32.mrb[0].mxu0
        %469 = vmatprep.mubr.f32.mxu0 %v341
        %470 = vmatmul.mubr.f32.gmra.mrb[0].mxu0 %v340
        %v471 = vpop.f32.mrb[0].mxu0
        %v472 = vadd.f32 0.0, %v471
        %v473 = vpop.f32.mrb[0].mxu0
        %474 = vmatprep.mubr.f32.mxu0 %v343
        %475 = vmatmul.mubr.f32.gmra.mrb[0].mxu0 %v342
        %v476 = vpop.f32.mrb[0].mxu0
        %v477 = vadd.f32 0.0, %v476
        %v478 = vpop.f32.mrb[0].mxu0
        %479 = vmatprep.mubr.f32.mxu0 %v345
        %480 = vmatmul.mubr.f32.gmra.mrb[0].mxu0 %v344
        %v481 = vpop.f32.mrb[0].mxu0
        %v482 = vadd.f32 0.0, %v481
        %v483 = vpop.f32.mrb[0].mxu0
        %484 = vmatprep.mubr.f32.mxu0 %v347
        %485 = vmatmul.mubr.f32.gmra.mrb[0].mxu0 %v346
        %v486 = vpop.f32.mrb[0].mxu0
        %v487 = vadd.f32 0.0, %v486
        %v488 = vpop.f32.mrb[0].mxu0
        %489 = vmatprep.mubr.f32.mxu0 %v349
        %490 = vmatmul.mubr.f32.gmra.mrb[0].mxu0 %v348
        %v491 = vpop.f32.mrb[0].mxu0
        %v492 = vadd.f32 0.0, %v491
        %v493 = vpop.f32.mrb[0].mxu0
        %494 = vdwg.mxu0
        %v495 = vadd.f32 %v302, %v417
        %v496 = vadd.f32 %v303, %v422
        %v497 = vadd.f32 %v304, %v427
        %v498 = vadd.f32 %v305, %v432
        %v499 = vadd.f32 %v306, %v437
        %v500 = vadd.f32 %v307, %v442
        %v501 = vadd.f32 %v308, %v447
        %v502 = vadd.f32 %v309, %v452
        %v503 = vadd.f32 %v310, %v457
        %v504 = vadd.f32 %v311, %v462
        %v505 = vadd.f32 %v312, %v467
        %v506 = vadd.f32 %v313, %v472
        %v507 = vadd.f32 %v314, %v477
        %v508 = vadd.f32 %v315, %v482
        %v509 = vadd.f32 %v316, %v487
        %v510 = vadd.f32 %v317, %v492
        %511 = vst [vmem:[%s243] sm:$0xff] %v495
        %512 = vst [vmem:[%s243 + $0x8] sm:$0xff] %v496
        %513 = vst [vmem:[%s243 + $0x10] sm:$0xff] %v497
        %514 = vst [vmem:[%s243 + $0x18] sm:$0xff] %v498
        %515 = vst [vmem:[%s243 + $0x20] sm:$0xff] %v499
        %516 = vst [vmem:[%s243 + $0x28] sm:$0xff] %v500
        %517 = vst [vmem:[%s243 + $0x30] sm:$0xff] %v501
        %518 = vst [vmem:[%s243 + $0x38] sm:$0xff] %v502
        %519 = vst [vmem:[%s243 + $0x40] sm:$0xff] %v503
        %520 = vst [vmem:[%s243 + $0x48] sm:$0xff] %v504
        %521 = vst [vmem:[%s243 + $0x50] sm:$0xff] %v505
        %522 = vst [vmem:[%s243 + $0x58] sm:$0xff] %v506
        %523 = vst [vmem:[%s243 + $0x60] sm:$0xff] %v507
        %524 = vst [vmem:[%s243 + $0x68] sm:$0xff] %v508
        %525 = vst [vmem:[%s243 + $0x70] sm:$0xff] %v509
        %526 = vst [vmem:[%s243 + $0x78] sm:$0xff] %v510
        // Predicated region
        $region49: #{tpu_custom_call.1} parent=31 // pred_check
          %p527 = pneg %p248
        $region50: #{tpu_custom_call.1} parent=31 // pred_check_branch
          %529 = sbr.rel (%p527) target = $region52
        $region51: #{tpu_custom_call.1} parent=31 // pred_region
          %s530 = sld [smem:[#allocation3]]
          %s531 = sld [smem:[#allocation4 + %s530]]
          %v532 = vld [vmem:[%s243] sm:$0xff]
          %v533 = vld [vmem:[%s243 + $0x8] sm:$0xff]
          %v534 = vld [vmem:[%s243 + $0x10] sm:$0xff]
          %v535 = vld [vmem:[%s243 + $0x18] sm:$0xff]
          %v536 = vld [vmem:[%s243 + $0x20] sm:$0xff]
          %v537 = vld [vmem:[%s243 + $0x28] sm:$0xff]
          %v538 = vld [vmem:[%s243 + $0x30] sm:$0xff]
          %v539 = vld [vmem:[%s243 + $0x38] sm:$0xff]
          %v540 = vld [vmem:[%s243 + $0x40] sm:$0xff]
          %v541 = vld [vmem:[%s243 + $0x48] sm:$0xff]
          %v542 = vld [vmem:[%s243 + $0x50] sm:$0xff]
          %v543 = vld [vmem:[%s243 + $0x58] sm:$0xff]
          %v544 = vld [vmem:[%s243 + $0x60] sm:$0xff]
          %v545 = vld [vmem:[%s243 + $0x68] sm:$0xff]
          %v546 = vld [vmem:[%s243 + $0x70] sm:$0xff]
          %v547 = vld [vmem:[%s243 + $0x78] sm:$0xff]
          %v548 = vstv %s531
          %v549 = vmul.f32 %v548, %v532
          %v550 = vmul.f32 %v548, %v533
          %v551 = vmul.f32 %v548, %v534
          %v552 = vmul.f32 %v548, %v535
          %v553 = vmul.f32 %v548, %v536
          %v554 = vmul.f32 %v548, %v537
          %v555 = vmul.f32 %v548, %v538
          %v556 = vmul.f32 %v548, %v539
          %v557 = vmul.f32 %v548, %v540
          %v558 = vmul.f32 %v548, %v541
          %v559 = vmul.f32 %v548, %v542
          %v560 = vmul.f32 %v548, %v543
          %v561 = vmul.f32 %v548, %v544
          %v562 = vmul.f32 %v548, %v545
          %v563 = vmul.f32 %v548, %v546
          %v564 = vmul.f32 %v548, %v547
          %565 = vst [vmem:[%s243] sm:$0xff] %v549
          %566 = vst [vmem:[%s243 + $0x8] sm:$0xff] %v550
          %567 = vst [vmem:[%s243 + $0x10] sm:$0xff] %v551
          %568 = vst [vmem:[%s243 + $0x18] sm:$0xff] %v552
          %569 = vst [vmem:[%s243 + $0x20] sm:$0xff] %v553
          %570 = vst [vmem:[%s243 + $0x28] sm:$0xff] %v554
          %571 = vst [vmem:[%s243 + $0x30] sm:$0xff] %v555
          %572 = vst [vmem:[%s243 + $0x38] sm:$0xff] %v556
          %573 = vst [vmem:[%s243 + $0x40] sm:$0xff] %v557
          %574 = vst [vmem:[%s243 + $0x48] sm:$0xff] %v558
          %575 = vst [vmem:[%s243 + $0x50] sm:$0xff] %v559
          %576 = vst [vmem:[%s243 + $0x58] sm:$0xff] %v560
          %577 = vst [vmem:[%s243 + $0x60] sm:$0xff] %v561
          %578 = vst [vmem:[%s243 + $0x68] sm:$0xff] %v562
          %579 = vst [vmem:[%s243 + $0x70] sm:$0xff] %v563
          %580 = vst [vmem:[%s243 + $0x78] sm:$0xff] %v564
        $region52: #{tpu_custom_call.1} parent=31 // pred_fallthru
          _
        %s581 = sand.u32 %s118, 1
        %s582 = scalar_lea.sflag [#allocation6], %s581
        %s583 = sand.u32 %s118, 1
        %s584 = smul.addr %s583, 128
        %s585 = scalar_lea.vmem [#allocation11], %s584
        // Predicated region
        $region53: #{tpu_custom_call.1} parent=31 // pred_check
          %p586 = pneg %p128
        $region54: #{tpu_custom_call.1} parent=31 // pred_check_branch
          %588 = sbr.rel (%p586) target = $region56
        $region55: #{tpu_custom_call.1} parent=31 // pred_region
          %s589 = smul.u32 16, %s28
          %s591 = ssub.s32 2048, 2048
          %592 = vsyncadd %s582, %s591
          %s593 = smul.addr %s589, 128
          %s594 = scalar_lea.hbm %s4, %s593
          %s595 = sshll.u32 %s585, 4
          %s596 = int_to_ptr.vmem [resolvable:$true] %s595
          %601 = dma.vmem_to_hbm [thread:$0]  %s596, 2048, %s594, %s582, 128, 128, 8
        $region56: #{tpu_custom_call.1} parent=31 // pred_fallthru
          _
      $region32: #{tpu_custom_call.1} parent=5 // pred_fallthru
        _
      %p602 = scmp.le.s32.totalorder 2, %s19
      // Predicated region
      $region57: #{tpu_custom_call.1} parent=5 // pred_check
        %p603 = pneg %p602
      $region58: #{tpu_custom_call.1} parent=5 // pred_check_branch
        %605 = sbr.rel (%p603) target = $region60
      $region59: #{tpu_custom_call.1} parent=5 // pred_region
        %s606 = ssub.s32 %s19, 2
        // Predicated region
        $region61: #{tpu_custom_call.1} parent=59 // pred_check
          %p607 = pneg %p134
        $region62: #{tpu_custom_call.1} parent=59 // pred_check_branch
          %609 = sbr.rel (%p607) target = $region64
        $region63: #{tpu_custom_call.1} parent=59 // pred_region
          %s610 = sand.u32 %s119, 1
          %s611 = scalar_lea.sflag [#allocation6], %s610
          %s612 = sand.u32 %s119, 1
          %s613 = smul.addr %s612, 128
          %s614 = scalar_lea.vmem [#allocation11], %s613
          %615 = dma.done %s611, 2048
        $region64: #{tpu_custom_call.1} parent=59 // pred_fallthru
          _
      $region60: #{tpu_custom_call.1} parent=5 // pred_fallthru
        _
    $region6: #{tpu_custom_call.1} parent=1 // loop_footer
      %s23 = sadd.s32 1, %s19
    $region7: #{tpu_custom_call.1} parent=1 // loop_footer_branch
      %18 = sbr.rel target = $region3
    $region8: #{tpu_custom_call.1} parent=1 // loop_exit
      _
    %616 = vsyncpa [#allocation5], 1
    %s617 = scalar_lea.sflag [#allocation5], 1
    %618 = vsyncpa %s617, 1
    %619 = vsyncpa [#allocation10], 1
    %620 = vsyncpa [#allocation6], 1
    %s621 = scalar_lea.sflag [#allocation6], 1
    %622 = vsyncpa %s621, 1
    %623 = vsyncpa [#allocation7], 1
    %s624 = scalar_lea.sflag [#allocation7], 1
    %625 = vsyncpa %s624, 1

// kernel: tpu_custom_call.1
$region0: #{tpu_custom_call.1}
  #allocation0 [shape = 'u32[]', space=smem, size = 0x4, offset = 0x4, fixed_abs, tag = 'smem constant byte address 0x4 - core index']
  #allocation1 [shape = 'u32[144,128]{1,0:T(1,128)}', space=vmem, size = 0x12000, scoped, tag = 'internal scratch']
  #allocation2 [shape = 's32[1]{0}', space=sflag, size = 0x4, scoped, tag = 'scoped memory for tpu_custom_call.1']
  #allocation3 [shape = 's32[1]{0:T(128)S(6)}', space=smem, size = 0x200, scoped, tag = 'prefetched SMEM operand 0']
  %s0 = inlined_call_operand.<no memory space> [shape: s32[1], index: 0, kind: input, shape index: {}]
  %s1 = inlined_call_operand.vmem [shape: f32[4], index: 1, kind: input, shape index: {}]
  %s2 = inlined_call_operand.hbm [shape: f32[4,256,256], index: 2, kind: input, shape index: {}]
  %s3 = inlined_call_operand.hbm [shape: f32[256,128], index: 3, kind: input, shape index: {}]
  %s4 = inlined_call_operand.hbm [shape: f32[256,128], index: 4, kind: output, shape index: {}]
  %s5 = sld [smem:[#allocation0]]
  $region65: #{tpu_custom_call.1} parent=0
    _
  %s7 = ssub.s32 1, %s5
  %s8 = scalar_select 0, %s7, %s5
  %9 = sst [smem:[#allocation3]] %s0
  $region1: #{tpu_custom_call.1} parent=0
    #allocation4 [shape = 'u8[512]{0}', space=smem, size = 0x200, scoped, tag = 'input window, operand 1, single buffered']
    #allocation5 [shape = 's32[2]{0}', space=sflag, size = 0x8, scoped, tag = 'scoped memory for tpu_custom_call.1']
    #allocation6 [shape = 's32[2]{0}', space=sflag, size = 0x8, scoped, tag = 'scoped memory for tpu_custom_call.1']
    #allocation7 [shape = 's32[2]{0}', space=sflag, size = 0x8, scoped, tag = 'scoped memory for tpu_custom_call.1']
    #allocation8 [shape = 'u8[262144]{0}', space=vmem, size = 0x40000, scoped, tag = 'input window, operand 2']
    #allocation9 [shape = 'u8[131072]{0}', space=vmem, size = 0x20000, scoped, tag = 'input window, operand 3, single buffered']
    #allocation10 [shape = 's32[1]{0}', space=sflag, size = 0x4, scoped, tag = 'scoped memory for tpu_custom_call.1']
    #allocation11 [shape = 'u8[131072]{0}', space=vmem, size = 0x20000, scoped, tag = 'output window, operand 0']
    %10 = vsyncpa [#allocation7], 0
    %11 = vsyncpa [#allocation5], 0
    %s12 = scalar_lea.sflag [#allocation5], 1
    %13 = vsyncpa %s12, 0
    %14 = vsyncpa [#allocation10], 0
    %15 = vsyncpa [#allocation6], 0
    %s16 = scalar_lea.sflag [#allocation6], 1
    %17 = vsyncpa %s16, 0
    loop: start=0, step=1, limit=4
    $region2: #{tpu_custom_call.1} parent=1 // loop_pre_header
      _
    $region3: #{tpu_custom_call.1} parent=1 // loop_header
      %s19 = sphi 0, %s23
      %p20 = scmp.ge.s32.totalorder %s19, 4
      %s26 = sphi 0, %s38
      %s27 = sphi 0, %s34
      %s28 = sphi 0, %s26
      %s29 = sphi 0, %s27
      %s30 = sphi 0, %s28
      %s31 = sphi 0, %s29
      %s39 = sphi 0, %s39
      %s41 = sphi 0, %s39
      %s42 = sphi 0, %s41
      %s56 = sphi 0, %s42
      %s68 = sphi 0, %s70
      %s71 = sphi 0, %s68
      %s72 = sphi 0, %s71
      %s88 = sphi 0, %s72
      %s92 = sphi 0, %s92
      %s94 = sphi 0, %s92
      %s95 = sphi 0, %s94
      %s109 = sphi 0, %s95
      %s115 = sphi 0, %s117
      %s118 = sphi 0, %s115
      %s119 = sphi 0, %s118
      %s135 = sphi 0, %s119
    $region4: #{tpu_custom_call.1} parent=1 // loop_header_branch
      %22 = sbr.rel (%p20) target = $region8
    $region5: #{tpu_custom_call.1} parent=1 // loop_body
      %s24 = ssub.s32 %s19, 1
      %s25 = ssub.s32 %s19, 2
      %s32 = sadd.s32 1, %s27
      %p33 = scmp.ge.s32.totalorder %s32, 1
      %s34 = scalar_select %p33, 0, %s32
      %s35 = sadd.s32 1, %s26
      %s36 = scalar_select %p33, %s35, %s26
      %p37 = scmp.ge.s32.totalorder %s36, 2
      %s38 = scalar_select %p37, 0, %s36
      %s40 = sadd.s32 %s39, 1
      %p43 = scmp.eq.s32.totalorder %s19, 1
      %p44 = scmp.ne.s32.totalorder %s39, %s41
      %p45 = scmp.eq.s32.totalorder %s19, 0
      %p46 = por %p44, %p45
      %p47 = scmp.ne.s32.totalorder %s39, %s41
      %p48 = scmp.eq.s32.totalorder %s24, 1
      %p49 = por %p47, %p48
      %p50 = scmp.ne.s32.totalorder %s41, %s42
      %p51 = scmp.eq.s32.totalorder %s24, 0
      %p52 = por %p50, %p51
      %p53 = scmp.ne.s32.totalorder %s41, %s42
      %p54 = scmp.eq.s32.totalorder %s25, 1
      %p55 = por %p53, %p54
      %p57 = scmp.ne.s32.totalorder %s42, %s56
      %p58 = scmp.eq.s32.totalorder %s25, 0
      %p59 = por %p57, %p58
      %s60 = sld [smem:[#allocation3]]
      %s61 = sld [smem:[#allocation3]]
      %s62 = ssub.s32 %s60, %s61
      %s63 = ssub.s32 %s26, %s38
      %s64 = sor.u32 %s62, %s63
      %s65 = ssub.s32 %s27, %s34
      %s66 = sor.u32 %s64, %s65
      %p67 = scmp.eq.s32.totalorder %s66, 0
      %s69 = sadd.s32 %s68, 1
      %s70 = scalar_select %p67, %s68, %s69
      %p73 = pneg %p67
      %p74 = scmp.eq.s32.totalorder %s19, 1
      %p75 = por %p73, %p74
      %p76 = scmp.ne.s32.totalorder %s68, %s71
      %p77 = scmp.eq.s32.totalorder %s19, 0
      %p78 = por %p76, %p77
      %p79 = scmp.ne.s32.totalorder %s68, %s71
      %p80 = scmp.eq.s32.totalorder %s24, 1
      %p81 = por %p79, %p80
      %p82 = scmp.ne.s32.totalorder %s71, %s72
      %p83 = scmp.eq.s32.totalorder %s24, 0
      %p84 = por %p82, %p83
      %p85 = scmp.ne.s32.totalorder %s71, %s72
      %p86 = scmp.eq.s32.totalorder %s25, 1
      %p87 = por %p85, %p86
      %p89 = scmp.ne.s32.totalorder %s72, %s88
      %p90 = scmp.eq.s32.totalorder %s25, 0
      %p91 = por %p89, %p90
      %s93 = sadd.s32 %s92, 1
      %p96 = scmp.eq.s32.totalorder %s19, 1
      %p97 = scmp.ne.s32.totalorder %s92, %s94
      %p98 = scmp.eq.s32.totalorder %s19, 0
      %p99 = por %p97, %p98
      %p100 = scmp.ne.s32.totalorder %s92, %s94
      %p101 = scmp.eq.s32.totalorder %s24, 1
      %p102 = por %p100, %p101
      %p103 = scmp.ne.s32.totalorder %s94, %s95
      %p104 = scmp.eq.s32.totalorder %s24, 0
      %p105 = por %p103, %p104
      %p106 = scmp.ne.s32.totalorder %s94, %s95
      %p107 = scmp.eq.s32.totalorder %s25, 1
      %p108 = por %p106, %p107
      %p110 = scmp.ne.s32.totalorder %s95, %s109
      %p111 = scmp.eq.s32.totalorder %s25, 0
      %p112 = por %p110, %p111
      %s113 = ssub.s32 %s26, %s38
      %p114 = scmp.eq.s32.totalorder %s113, 0
      %s116 = sadd.s32 %s115, 1
      %s117 = scalar_select %p114, %s115, %s116
      %p120 = pneg %p114
      %p121 = scmp.eq.s32.totalorder %s19, 1
      %p122 = por %p120, %p121
      %p123 = scmp.ne.s32.totalorder %s115, %s118
      %p124 = scmp.eq.s32.totalorder %s19, 0
      %p125 = por %p123, %p124
      %p126 = scmp.ne.s32.totalorder %s115, %s118
      %p127 = scmp.eq.s32.totalorder %s24, 1
      %p128 = por %p126, %p127
      %p129 = scmp.ne.s32.totalorder %s118, %s119
      %p130 = scmp.eq.s32.totalorder %s24, 0
      %p131 = por %p129, %p130
      %p132 = scmp.ne.s32.totalorder %s118, %s119
      %p133 = scmp.eq.s32.totalorder %s25, 1
      %p134 = por %p132, %p133
      %p136 = scmp.ne.s32.totalorder %s119, %s135
      %p137 = scmp.eq.s32.totalorder %s25, 0
      %p138 = por %p136, %p137
      %p139 = scmp.le.s32.totalorder 1, %s19
      %p140 = scmp.lt.s32.totalorder %s19, 3
      %p141 = pnand %p139, %p140
      %p142 = pneg %p141
      // Predicated region
      $region9: #{tpu_custom_call.1} parent=5 // pred_check
        _
      $region10: #{tpu_custom_call.1} parent=5 // pred_check_branch
        %144 = sbr.rel (%p141) target = $region12
      $region11: #{tpu_custom_call.1} parent=5 // pred_region
        %s145 = ssub.s32 %s19, 1
        // Predicated region
        $region13: #{tpu_custom_call.1} parent=11 // pred_check
          %p146 = pneg %p52
        $region14: #{tpu_custom_call.1} parent=11 // pred_check_branch
          %148 = sbr.rel (%p146) target = $region16
        $region15: #{tpu_custom_call.1} parent=11 // pred_region
          %s150 = ssub.s32 16, 16
          %151 = vsyncadd [#allocation7], %s150
          %s153 = sshll.u32 %s1, 4
          %s154 = int_to_ptr.vmem [resolvable:$true] %s153
          %156 = dma.vmem_to_smem %s154, 16, [#allocation4], [#allocation7]
        $region16: #{tpu_custom_call.1} parent=11 // pred_fallthru
          _
        // Predicated region
        $region17: #{tpu_custom_call.1} parent=11 // pred_check
          %p157 = pneg %p105
        $region18: #{tpu_custom_call.1} parent=11 // pred_check_branch
          %159 = sbr.rel (%p157) target = $region20
        $region19: #{tpu_custom_call.1} parent=11 // pred_region
          %s161 = ssub.s32 4096, 4096
          %162 = vsyncadd [#allocation10], %s161
          %s163 = sshll.u32 [#allocation9], 4
          %s164 = int_to_ptr.vmem [resolvable:$true] %s163
          %169 = dma.hbm_to_vmem [thread:$0]  %s3, 4096, %s164, [#allocation10], 128, 128, 8
        $region20: #{tpu_custom_call.1} parent=11 // pred_fallthru
          _
      $region12: #{tpu_custom_call.1} parent=5 // pred_fallthru
        _
      %p170 = scmp.lt.s32.totalorder %s19, 2
      // Predicated region
      $region21: #{tpu_custom_call.1} parent=5 // pred_check
        %p171 = pneg %p170
      $region22: #{tpu_custom_call.1} parent=5 // pred_check_branch
        %173 = sbr.rel (%p171) target = $region24
      $region23: #{tpu_custom_call.1} parent=5 // pred_region
        // Predicated region
        $region25: #{tpu_custom_call.1} parent=23 // pred_check
          %p174 = pneg %p78
        $region26: #{tpu_custom_call.1} parent=23 // pred_check_branch
          %176 = sbr.rel (%p174) target = $region28
        $region27: #{tpu_custom_call.1} parent=23 // pred_region
          %s177 = sand.u32 %s68, 1
          %s178 = scalar_lea.sflag [#allocation5], %s177
          %s179 = sand.u32 %s68, 1
          %s180 = smul.addr %s179, 256
          %s181 = scalar_lea.vmem [#allocation8], %s180
          %s182 = sld [smem:[#allocation3]]
          %s183 = smul.u32 16, %s26
          %s184 = smul.u32 2, %s27
          %s186 = ssub.s32 4096, 4096
          %187 = vsyncadd %s178, %s186
          %s188 = smul.addr %s183, 2
          %s189 = sadd.s32 %s184, %s188
          %s190 = smul.addr %s182, 64
          %s191 = sadd.s32 %s189, %s190
          %s192 = smul.addr %s191, 128
          %s193 = scalar_lea.hbm %s2, %s192
          %s194 = sshll.u32 %s181, 4
          %s195 = int_to_ptr.vmem [resolvable:$true] %s194
          %200 = dma.hbm_to_vmem [thread:$0]  %s193, 4096, %s195, %s178, 256, 256, 16
        $region28: #{tpu_custom_call.1} parent=23 // pred_fallthru
          _
      $region24: #{tpu_custom_call.1} parent=5 // pred_fallthru
        _
      %p201 = scmp.le.s32.totalorder 1, %s19
      %p202 = scmp.lt.s32.totalorder %s19, 3
      %p203 = pnand %p201, %p202
      %p204 = pneg %p203
      // Predicated region
      $region29: #{tpu_custom_call.1} parent=5 // pred_check
        _
      $region30: #{tpu_custom_call.1} parent=5 // pred_check_branch
        %206 = sbr.rel (%p203) target = $region32
      $region31: #{tpu_custom_call.1} parent=5 // pred_region
        %s207 = ssub.s32 %s19, 1
        // Predicated region
        $region33: #{tpu_custom_call.1} parent=31 // pred_check
          %p208 = pneg %p52
        $region34: #{tpu_custom_call.1} parent=31 // pred_check_branch
          %210 = sbr.rel (%p208) target = $region36
        $region35: #{tpu_custom_call.1} parent=31 // pred_region
          %211 = dma.done [#allocation7], 16
        $region36: #{tpu_custom_call.1} parent=31 // pred_fallthru
          _
        %s212 = sand.u32 %s71, 1
        %s213 = scalar_lea.sflag [#allocation5], %s212
        %s214 = sand.u32 %s71, 1
        %s215 = smul.addr %s214, 256
        %s216 = scalar_lea.vmem [#allocation8], %s215
        // Predicated region
        $region37: #{tpu_custom_call.1} parent=31 // pred_check
          %p217 = pneg %p84
        $region38: #{tpu_custom_call.1} parent=31 // pred_check_branch
          %219 = sbr.rel (%p217) target = $region40
        $region39: #{tpu_custom_call.1} parent=31 // pred_region
          %220 = dma.done %s213, 4096
        $region40: #{tpu_custom_call.1} parent=31 // pred_fallthru
          _
        // Predicated region
        $region41: #{tpu_custom_call.1} parent=31 // pred_check
          %p221 = pneg %p105
        $region42: #{tpu_custom_call.1} parent=31 // pred_check_branch
          %223 = sbr.rel (%p221) target = $region44
        $region43: #{tpu_custom_call.1} parent=31 // pred_region
          %224 = dma.done [#allocation10], 4096
        $region44: #{tpu_custom_call.1} parent=31 // pred_fallthru
          _
        %225 = sfence
        %p226 = pneg %p52
        %p227 = pneg %p49
        %s228 = sand.u32 %s71, 1
        %s229 = scalar_lea.sflag [#allocation5], %s228
        %s230 = sand.u32 %s71, 1
        %s231 = smul.addr %s230, 256
        %s232 = scalar_lea.vmem [#allocation8], %s231
        %p233 = pneg %p84
        %p234 = pneg %p81
        %p235 = pneg %p105
        %p236 = pneg %p102
        %p237 = pneg %p131
        %p238 = pneg %p128
        %s239 = sand.u32 %s118, 1
        %s240 = scalar_lea.sflag [#allocation6], %s239
        %s241 = sand.u32 %s118, 1
        %s242 = smul.addr %s241, 128
        %s243 = scalar_lea.vmem [#allocation11], %s242
        %s244 = sld [smem:[#allocation3]]
        %s245 = smul.u32 16, %s28
        %s246 = smul.u32 2, %s29
        %s247 = smul.u32 16, %s28
        %p248 = scmp.eq.s32.totalorder %s29, 0
        // Predicated region
        $region45: #{tpu_custom_call.1} parent=31 // pred_check
          %p249 = pneg %p248
        $region46: #{tpu_custom_call.1} parent=31 // pred_check_branch
          %251 = sbr.rel (%p249) target = $region48
        $region47: #{tpu_custom_call.1} parent=31 // pred_region
          %252 = vst [vmem:[%s243] sm:$0xff] 0.0
          %253 = vst [vmem:[%s243 + $0x8] sm:$0xff] 0.0
          %254 = vst [vmem:[%s243 + $0x10] sm:$0xff] 0.0
          %255 = vst [vmem:[%s243 + $0x18] sm:$0xff] 0.0
          %256 = vst [vmem:[%s243 + $0x20] sm:$0xff] 0.0
          %257 = vst [vmem:[%s243 + $0x28] sm:$0xff] 0.0
          %258 = vst [vmem:[%s243 + $0x30] sm:$0xff] 0.0
          %259 = vst [vmem:[%s243 + $0x38] sm:$0xff] 0.0
          %260 = vst [vmem:[%s243 + $0x40] sm:$0xff] 0.0
          %261 = vst [vmem:[%s243 + $0x48] sm:$0xff] 0.0
          %262 = vst [vmem:[%s243 + $0x50] sm:$0xff] 0.0
          %263 = vst [vmem:[%s243 + $0x58] sm:$0xff] 0.0
          %264 = vst [vmem:[%s243 + $0x60] sm:$0xff] 0.0
          %265 = vst [vmem:[%s243 + $0x68] sm:$0xff] 0.0
          %266 = vst [vmem:[%s243 + $0x70] sm:$0xff] 0.0
          %267 = vst [vmem:[%s243 + $0x78] sm:$0xff] 0.0
        $region48: #{tpu_custom_call.1} parent=31 // pred_fallthru
          _
        %s268 = smul.u32 %s29, 256
        %s269 = scalar_lea.vmem [#allocation9], %s268
        %v270 = vld [vmem:[%s269] sm:$0xff]
        %v271 = vld [vmem:[%s269 + $0x8] sm:$0xff]
        %v272 = vld [vmem:[%s269 + $0x10] sm:$0xff]
        %v273 = vld [vmem:[%s269 + $0x18] sm:$0xff]
        %v274 = vld [vmem:[%s269 + $0x20] sm:$0xff]
        %v275 = vld [vmem:[%s269 + $0x28] sm:$0xff]
        %v276 = vld [vmem:[%s269 + $0x30] sm:$0xff]
        %v277 = vld [vmem:[%s269 + $0x38] sm:$0xff]
        %v278 = vld [vmem:[%s269 + $0x40] sm:$0xff]
        %v279 = vld [vmem:[%s269 + $0x48] sm:$0xff]
        %v280 = vld [vmem:[%s269 + $0x50] sm:$0xff]
        %v281 = vld [vmem:[%s269 + $0x58] sm:$0xff]
        %v282 = vld [vmem:[%s269 + $0x60] sm:$0xff]
        %v283 = vld [vmem:[%s269 + $0x68] sm:$0xff]
        %v284 = vld [vmem:[%s269 + $0x70] sm:$0xff]
        %v285 = vld [vmem:[%s269 + $0x78] sm:$0xff]
        %v286 = vld [vmem:[%s269 + $0x80] sm:$0xff]
        %v287 = vld [vmem:[%s269 + $0x88] sm:$0xff]
        %v288 = vld [vmem:[%s269 + $0x90] sm:$0xff]
        %v289 = vld [vmem:[%s269 + $0x98] sm:$0xff]
        %v290 = vld [vmem:[%s269 + $0xa0] sm:$0xff]
        %v291 = vld [vmem:[%s269 + $0xa8] sm:$0xff]
        %v292 = vld [vmem:[%s269 + $0xb0] sm:$0xff]
        %v293 = vld [vmem:[%s269 + $0xb8] sm:$0xff]
        %v294 = vld [vmem:[%s269 + $0xc0] sm:$0xff]
        %v295 = vld [vmem:[%s269 + $0xc8] sm:$0xff]
        %v296 = vld [vmem:[%s269 + $0xd0] sm:$0xff]
        %v297 = vld [vmem:[%s269 + $0xd8] sm:$0xff]
        %v298 = vld [vmem:[%s269 + $0xe0] sm:$0xff]
        %v299 = vld [vmem:[%s269 + $0xe8] sm:$0xff]
        %v300 = vld [vmem:[%s269 + $0xf0] sm:$0xff]
        %v301 = vld [vmem:[%s269 + $0xf8] sm:$0xff]
        %v302 = vld [vmem:[%s243] sm:$0xff]
        %v303 = vld [vmem:[%s243 + $0x8] sm:$0xff]
        %v304 = vld [vmem:[%s243 + $0x10] sm:$0xff]
        %v305 = vld [vmem:[%s243 + $0x18] sm:$0xff]
        %v306 = vld [vmem:[%s243 + $0x20] sm:$0xff]
        %v307 = vld [vmem:[%s243 + $0x28] sm:$0xff]
        %v308 = vld [vmem:[%s243 + $0x30] sm:$0xff]
        %v309 = vld [vmem:[%s243 + $0x38] sm:$0xff]
        %v310 = vld [vmem:[%s243 + $0x40] sm:$0xff]
        %v311 = vld [vmem:[%s243 + $0x48] sm:$0xff]
        %v312 = vld [vmem:[%s243 + $0x50] sm:$0xff]
        %v313 = vld [vmem:[%s243 + $0x58] sm:$0xff]
        %v314 = vld [vmem:[%s243 + $0x60] sm:$0xff]
        %v315 = vld [vmem:[%s243 + $0x68] sm:$0xff]
        %v316 = vld [vmem:[%s243 + $0x70] sm:$0xff]
        %v317 = vld [vmem:[%s243 + $0x78] sm:$0xff]
        %v318 = vld [vmem:[%s216] sm:$0xff]
        %v319 = vld [vmem:[%s216 + $0x8] sm:$0xff]
        %v320 = vld [vmem:[%s216 + $0x10] sm:$0xff]
        %v321 = vld [vmem:[%s216 + $0x18] sm:$0xff]
        %v322 = vld [vmem:[%s216 + $0x20] sm:$0xff]
        %v323 = vld [vmem:[%s216 + $0x28] sm:$0xff]
        %v324 = vld [vmem:[%s216 + $0x30] sm:$0xff]
        %v325 = vld [vmem:[%s216 + $0x38] sm:$0xff]
        %v326 = vld [vmem:[%s216 + $0x40] sm:$0xff]
        %v327 = vld [vmem:[%s216 + $0x48] sm:$0xff]
        %v328 = vld [vmem:[%s216 + $0x50] sm:$0xff]
        %v329 = vld [vmem:[%s216 + $0x58] sm:$0xff]
        %v330 = vld [vmem:[%s216 + $0x60] sm:$0xff]
        %v331 = vld [vmem:[%s216 + $0x68] sm:$0xff]
        %v332 = vld [vmem:[%s216 + $0x70] sm:$0xff]
        %v333 = vld [vmem:[%s216 + $0x78] sm:$0xff]
        %v334 = vld [vmem:[%s216 + $0x80] sm:$0xff]
        %v335 = vld [vmem:[%s216 + $0x88] sm:$0xff]
        %v336 = vld [vmem:[%s216 + $0x90] sm:$0xff]
        %v337 = vld [vmem:[%s216 + $0x98] sm:$0xff]
        %v338 = vld [vmem:[%s216 + $0xa0] sm:$0xff]
        %v339 = vld [vmem:[%s216 + $0xa8] sm:$0xff]
        %v340 = vld [vmem:[%s216 + $0xb0] sm:$0xff]
        %v341 = vld [vmem:[%s216 + $0xb8] sm:$0xff]
        %v342 = vld [vmem:[%s216 + $0xc0] sm:$0xff]
        %v343 = vld [vmem:[%s216 + $0xc8] sm:$0xff]
        %v344 = vld [vmem:[%s216 + $0xd0] sm:$0xff]
        %v345 = vld [vmem:[%s216 + $0xd8] sm:$0xff]
        %v346 = vld [vmem:[%s216 + $0xe0] sm:$0xff]
        %v347 = vld [vmem:[%s216 + $0xe8] sm:$0xff]
        %v348 = vld [vmem:[%s216 + $0xf0] sm:$0xff]
        %v349 = vld [vmem:[%s216 + $0xf8] sm:$0xff]
        %350 = vmatprep.subr.mxu0 0.0
        %351 = vmatpush1.msra.mxu0 %v270
        %352 = vmatprep.subr.mxu0 0.0
        %353 = vmatpush1.msra.mxu0 %v271
        %354 = vmatprep.subr.mxu0 0.0
        %355 = vmatpush1.msra.mxu0 %v272
        %356 = vmatprep.subr.mxu0 0.0
        %357 = vmatpush1.msra.mxu0 %v273
        %358 = vmatprep.subr.mxu0 0.0
        %359 = vmatpush1.msra.mxu0 %v274
        %360 = vmatprep.subr.mxu0 0.0
        %361 = vmatpush1.msra.mxu0 %v275
        %362 = vmatprep.subr.mxu0 0.0
        %363 = vmatpush1.msra.mxu0 %v276
        %364 = vmatprep.subr.mxu0 0.0
        %365 = vmatpush1.msra.mxu0 %v277
        %366 = vmatprep.subr.mxu0 0.0
        %367 = vmatpush1.msra.mxu0 %v278
        %368 = vmatprep.subr.mxu0 0.0
        %369 = vmatpush1.msra.mxu0 %v279
        %370 = vmatprep.subr.mxu0 0.0
        %371 = vmatpush1.msra.mxu0 %v280
        %372 = vmatprep.subr.mxu0 0.0
        %373 = vmatpush1.msra.mxu0 %v281
        %374 = vmatprep.subr.mxu0 0.0
        %375 = vmatpush1.msra.mxu0 %v282
        %376 = vmatprep.subr.mxu0 0.0
        %377 = vmatpush1.msra.mxu0 %v283
        %378 = vmatprep.subr.mxu0 0.0
        %379 = vmatpush1.msra.mxu0 %v284
        %380 = vmatprep.subr.mxu0 0.0
        %381 = vmatpush1.msra.mxu0 %v285
        %382 = vmatprep.subr.mxu0 0.0
        %383 = vmatpush1.msra.mxu0 %v286
        %384 = vmatprep.subr.mxu0 0.0
        %385 = vmatpush1.msra.mxu0 %v287
        %386 = vmatprep.subr.mxu0 0.0
        %387 = vmatpush1.msra.mxu0 %v288
        %388 = vmatprep.subr.mxu0 0.0
        %389 = vmatpush1.msra.mxu0 %v289
        %390 = vmatprep.subr.mxu0 0.0
        %391 = vmatpush1.msra.mxu0 %v290
        %392 = vmatprep.subr.mxu0 0.0
        %393 = vmatpush1.msra.mxu0 %v291
        %394 = vmatprep.subr.mxu0 0.0
        %395 = vmatpush1.msra.mxu0 %v292
        %396 = vmatprep.subr.mxu0 0.0
        %397 = vmatpush1.msra.mxu0 %v293
        %398 = vmatprep.subr.mxu0 0.0
        %399 = vmatpush1.msra.mxu0 %v294
        %400 = vmatprep.subr.mxu0 0.0
        %401 = vmatpush1.msra.mxu0 %v295
        %402 = vmatprep.subr.mxu0 0.0
        %403 = vmatpush1.msra.mxu0 %v296
        %404 = vmatprep.subr.mxu0 0.0
        %405 = vmatpush1.msra.mxu0 %v297
        %406 = vmatprep.subr.mxu0 0.0
        %407 = vmatpush1.msra.mxu0 %v298
        %408 = vmatprep.subr.mxu0 0.0
        %409 = vmatpush1.msra.mxu0 %v299
        %410 = vmatprep.subr.mxu0 0.0
        %411 = vmatpush1.msra.mxu0 %v300
        %412 = vmatprep.subr.mxu0 0.0
        %413 = vmatpush1.msra.mxu0 %v301
        %414 = vmatprep.mubr.f32.mxu0 %v319
        %415 = vmatmul.mubr.f32.gmra.mrb[0].mxu0 %v318
        %v416 = vpop.f32.mrb[0].mxu0
        %v417 = vadd.f32 0.0, %v416
        %v418 = vpop.f32.mrb[0].mxu0
        %419 = vmatprep.mubr.f32.mxu0 %v321
        %420 = vmatmul.mubr.f32.gmra.mrb[0].mxu0 %v320
        %v421 = vpop.f32.mrb[0].mxu0
        %v422 = vadd.f32 0.0, %v421
        %v423 = vpop.f32.mrb[0].mxu0
        %424 = vmatprep.mubr.f32.mxu0 %v323
        %425 = vmatmul.mubr.f32.gmra.mrb[0].mxu0 %v322
        %v426 = vpop.f32.mrb[0].mxu0
        %v427 = vadd.f32 0.0, %v426
        %v428 = vpop.f32.mrb[0].mxu0
        %429 = vmatprep.mubr.f32.mxu0 %v325
        %430 = vmatmul.mubr.f32.gmra.mrb[0].mxu0 %v324
        %v431 = vpop.f32.mrb[0].mxu0
        %v432 = vadd.f32 0.0, %v431
        %v433 = vpop.f32.mrb[0].mxu0
        %434 = vmatprep.mubr.f32.mxu0 %v327
        %435 = vmatmul.mubr.f32.gmra.mrb[0].mxu0 %v326
        %v436 = vpop.f32.mrb[0].mxu0
        %v437 = vadd.f32 0.0, %v436
        %v438 = vpop.f32.mrb[0].mxu0
        %439 = vmatprep.mubr.f32.mxu0 %v329
        %440 = vmatmul.mubr.f32.gmra.mrb[0].mxu0 %v328
        %v441 = vpop.f32.mrb[0].mxu0
        %v442 = vadd.f32 0.0, %v441
        %v443 = vpop.f32.mrb[0].mxu0
        %444 = vmatprep.mubr.f32.mxu0 %v331
        %445 = vmatmul.mubr.f32.gmra.mrb[0].mxu0 %v330
        %v446 = vpop.f32.mrb[0].mxu0
        %v447 = vadd.f32 0.0, %v446
        %v448 = vpop.f32.mrb[0].mxu0
        %449 = vmatprep.mubr.f32.mxu0 %v333
        %450 = vmatmul.mubr.f32.gmra.mrb[0].mxu0 %v332
        %v451 = vpop.f32.mrb[0].mxu0
        %v452 = vadd.f32 0.0, %v451
        %v453 = vpop.f32.mrb[0].mxu0
        %454 = vmatprep.mubr.f32.mxu0 %v335
        %455 = vmatmul.mubr.f32.gmra.mrb[0].mxu0 %v334
        %v456 = vpop.f32.mrb[0].mxu0
        %v457 = vadd.f32 0.0, %v456
        %v458 = vpop.f32.mrb[0].mxu0
        %459 = vmatprep.mubr.f32.mxu0 %v337
        %460 = vmatmul.mubr.f32.gmra.mrb[0].mxu0 %v336
        %v461 = vpop.f32.mrb[0].mxu0
        %v462 = vadd.f32 0.0, %v461
        %v463 = vpop.f32.mrb[0].mxu0
        %464 = vmatprep.mubr.f32.mxu0 %v339
        %465 = vmatmul.mubr.f32.gmra.mrb[0].mxu0 %v338
        %v466 = vpop.f32.mrb[0].mxu0
        %v467 = vadd.f32 0.0, %v466
        %v468 = vpop.f32.mrb[0].mxu0
        %469 = vmatprep.mubr.f32.mxu0 %v341
        %470 = vmatmul.mubr.f32.gmra.mrb[0].mxu0 %v340
        %v471 = vpop.f32.mrb[0].mxu0
        %v472 = vadd.f32 0.0, %v471
        %v473 = vpop.f32.mrb[0].mxu0
        %474 = vmatprep.mubr.f32.mxu0 %v343
        %475 = vmatmul.mubr.f32.gmra.mrb[0].mxu0 %v342
        %v476 = vpop.f32.mrb[0].mxu0
        %v477 = vadd.f32 0.0, %v476
        %v478 = vpop.f32.mrb[0].mxu0
        %479 = vmatprep.mubr.f32.mxu0 %v345
        %480 = vmatmul.mubr.f32.gmra.mrb[0].mxu0 %v344
        %v481 = vpop.f32.mrb[0].mxu0
        %v482 = vadd.f32 0.0, %v481
        %v483 = vpop.f32.mrb[0].mxu0
        %484 = vmatprep.mubr.f32.mxu0 %v347
        %485 = vmatmul.mubr.f32.gmra.mrb[0].mxu0 %v346
        %v486 = vpop.f32.mrb[0].mxu0
        %v487 = vadd.f32 0.0, %v486
        %v488 = vpop.f32.mrb[0].mxu0
        %489 = vmatprep.mubr.f32.mxu0 %v349
        %490 = vmatmul.mubr.f32.gmra.mrb[0].mxu0 %v348
        %v491 = vpop.f32.mrb[0].mxu0
        %v492 = vadd.f32 0.0, %v491
        %v493 = vpop.f32.mrb[0].mxu0
        %494 = vdwg.mxu0
        %v495 = vadd.f32 %v302, %v417
        %v496 = vadd.f32 %v303, %v422
        %v497 = vadd.f32 %v304, %v427
        %v498 = vadd.f32 %v305, %v432
        %v499 = vadd.f32 %v306, %v437
        %v500 = vadd.f32 %v307, %v442
        %v501 = vadd.f32 %v308, %v447
        %v502 = vadd.f32 %v309, %v452
        %v503 = vadd.f32 %v310, %v457
        %v504 = vadd.f32 %v311, %v462
        %v505 = vadd.f32 %v312, %v467
        %v506 = vadd.f32 %v313, %v472
        %v507 = vadd.f32 %v314, %v477
        %v508 = vadd.f32 %v315, %v482
        %v509 = vadd.f32 %v316, %v487
        %v510 = vadd.f32 %v317, %v492
        %511 = vst [vmem:[%s243] sm:$0xff] %v495
        %512 = vst [vmem:[%s243 + $0x8] sm:$0xff] %v496
        %513 = vst [vmem:[%s243 + $0x10] sm:$0xff] %v497
        %514 = vst [vmem:[%s243 + $0x18] sm:$0xff] %v498
        %515 = vst [vmem:[%s243 + $0x20] sm:$0xff] %v499
        %516 = vst [vmem:[%s243 + $0x28] sm:$0xff] %v500
        %517 = vst [vmem:[%s243 + $0x30] sm:$0xff] %v501
        %518 = vst [vmem:[%s243 + $0x38] sm:$0xff] %v502
        %519 = vst [vmem:[%s243 + $0x40] sm:$0xff] %v503
        %520 = vst [vmem:[%s243 + $0x48] sm:$0xff] %v504
        %521 = vst [vmem:[%s243 + $0x50] sm:$0xff] %v505
        %522 = vst [vmem:[%s243 + $0x58] sm:$0xff] %v506
        %523 = vst [vmem:[%s243 + $0x60] sm:$0xff] %v507
        %524 = vst [vmem:[%s243 + $0x68] sm:$0xff] %v508
        %525 = vst [vmem:[%s243 + $0x70] sm:$0xff] %v509
        %526 = vst [vmem:[%s243 + $0x78] sm:$0xff] %v510
        // Predicated region
        $region49: #{tpu_custom_call.1} parent=31 // pred_check
          %p527 = pneg %p248
        $region50: #{tpu_custom_call.1} parent=31 // pred_check_branch
          %529 = sbr.rel (%p527) target = $region52
        $region51: #{tpu_custom_call.1} parent=31 // pred_region
          %s530 = sld [smem:[#allocation3]]
          %s531 = sld [smem:[#allocation4 + %s530]]
          %v532 = vld [vmem:[%s243] sm:$0xff]
          %v533 = vld [vmem:[%s243 + $0x8] sm:$0xff]
          %v534 = vld [vmem:[%s243 + $0x10] sm:$0xff]
          %v535 = vld [vmem:[%s243 + $0x18] sm:$0xff]
          %v536 = vld [vmem:[%s243 + $0x20] sm:$0xff]
          %v537 = vld [vmem:[%s243 + $0x28] sm:$0xff]
          %v538 = vld [vmem:[%s243 + $0x30] sm:$0xff]
          %v539 = vld [vmem:[%s243 + $0x38] sm:$0xff]
          %v540 = vld [vmem:[%s243 + $0x40] sm:$0xff]
          %v541 = vld [vmem:[%s243 + $0x48] sm:$0xff]
          %v542 = vld [vmem:[%s243 + $0x50] sm:$0xff]
          %v543 = vld [vmem:[%s243 + $0x58] sm:$0xff]
          %v544 = vld [vmem:[%s243 + $0x60] sm:$0xff]
          %v545 = vld [vmem:[%s243 + $0x68] sm:$0xff]
          %v546 = vld [vmem:[%s243 + $0x70] sm:$0xff]
          %v547 = vld [vmem:[%s243 + $0x78] sm:$0xff]
          %v548 = vstv %s531
          %v549 = vmul.f32 %v548, %v532
          %v550 = vmul.f32 %v548, %v533
          %v551 = vmul.f32 %v548, %v534
          %v552 = vmul.f32 %v548, %v535
          %v553 = vmul.f32 %v548, %v536
          %v554 = vmul.f32 %v548, %v537
          %v555 = vmul.f32 %v548, %v538
          %v556 = vmul.f32 %v548, %v539
          %v557 = vmul.f32 %v548, %v540
          %v558 = vmul.f32 %v548, %v541
          %v559 = vmul.f32 %v548, %v542
          %v560 = vmul.f32 %v548, %v543
          %v561 = vmul.f32 %v548, %v544
          %v562 = vmul.f32 %v548, %v545
          %v563 = vmul.f32 %v548, %v546
          %v564 = vmul.f32 %v548, %v547
          %565 = vst [vmem:[%s243] sm:$0xff] %v549
          %566 = vst [vmem:[%s243 + $0x8] sm:$0xff] %v550
          %567 = vst [vmem:[%s243 + $0x10] sm:$0xff] %v551
          %568 = vst [vmem:[%s243 + $0x18] sm:$0xff] %v552
          %569 = vst [vmem:[%s243 + $0x20] sm:$0xff] %v553
          %570 = vst [vmem:[%s243 + $0x28] sm:$0xff] %v554
          %571 = vst [vmem:[%s243 + $0x30] sm:$0xff] %v555
          %572 = vst [vmem:[%s243 + $0x38] sm:$0xff] %v556
          %573 = vst [vmem:[%s243 + $0x40] sm:$0xff] %v557
          %574 = vst [vmem:[%s243 + $0x48] sm:$0xff] %v558
          %575 = vst [vmem:[%s243 + $0x50] sm:$0xff] %v559
          %576 = vst [vmem:[%s243 + $0x58] sm:$0xff] %v560
          %577 = vst [vmem:[%s243 + $0x60] sm:$0xff] %v561
          %578 = vst [vmem:[%s243 + $0x68] sm:$0xff] %v562
          %579 = vst [vmem:[%s243 + $0x70] sm:$0xff] %v563
          %580 = vst [vmem:[%s243 + $0x78] sm:$0xff] %v564
        $region52: #{tpu_custom_call.1} parent=31 // pred_fallthru
          _
        %s581 = sand.u32 %s118, 1
        %s582 = scalar_lea.sflag [#allocation6], %s581
        %s583 = sand.u32 %s118, 1
        %s584 = smul.addr %s583, 128
        %s585 = scalar_lea.vmem [#allocation11], %s584
        // Predicated region
        $region53: #{tpu_custom_call.1} parent=31 // pred_check
          %p586 = pneg %p128
        $region54: #{tpu_custom_call.1} parent=31 // pred_check_branch
          %588 = sbr.rel (%p586) target = $region56
        $region55: #{tpu_custom_call.1} parent=31 // pred_region
          %s589 = smul.u32 16, %s28
          %s591 = ssub.s32 2048, 2048
          %592 = vsyncadd %s582, %s591
          %s593 = smul.addr %s589, 128
          %s594 = scalar_lea.hbm %s4, %s593
          %s595 = sshll.u32 %s585, 4
          %s596 = int_to_ptr.vmem [resolvable:$true] %s595
          %601 = dma.vmem_to_hbm [thread:$0]  %s596, 2048, %s594, %s582, 128, 128, 8
        $region56: #{tpu_custom_call.1} parent=31 // pred_fallthru
          _
      $region32: #{tpu_custom_call.1} parent=5 // pred_fallthru
        _
      %p602 = scmp.le.s32.totalorder 2, %s19
      // Predicated region
      $region57: #{tpu_custom_call.1} parent=5 // pred_check
        %p603 = pneg %p602
      $region58: #{tpu_custom_call.1} parent=5 // pred_check_branch
        %605 = sbr.rel (%p603) target = $region60
      $region59: #{tpu_custom_call.1} parent=5 // pred_region
        %s606 = ssub.s32 %s19, 2
        // Predicated region
        $region61: #{tpu_custom_call.1} parent=59 // pred_check
          %p607 = pneg %p134
        $region62: #{tpu_custom_call.1} parent=59 // pred_check_branch
          %609 = sbr.rel (%p607) target = $region64
        $region63: #{tpu_custom_call.1} parent=59 // pred_region
          %s610 = sand.u32 %s119, 1
          %s611 = scalar_lea.sflag [#allocation6], %s610
          %s612 = sand.u32 %s119, 1
          %s613 = smul.addr %s612, 128
          %s614 = scalar_lea.vmem [#allocation11], %s613
          %615 = dma.done %s611, 2048
        $region64: #{tpu_custom_call.1} parent=59 // pred_fallthru
          _
      $region60: #{tpu_custom_call.1} parent=5 // pred_fallthru
        _
    $region6: #{tpu_custom_call.1} parent=1 // loop_footer
      %s23 = sadd.s32 1, %s19
    $region7: #{tpu_custom_call.1} parent=1 // loop_footer_branch
      %18 = sbr.rel target = $region3
    $region8: #{tpu_custom_call.1} parent=1 // loop_exit
      _
    %616 = vsyncpa [#allocation5], 1
    %s617 = scalar_lea.sflag [#allocation5], 1
    %618 = vsyncpa %s617, 1
    %619 = vsyncpa [#allocation10], 1
    %620 = vsyncpa [#allocation6], 1
    %s621 = scalar_lea.sflag [#allocation6], 1
    %622 = vsyncpa %s621, 1
    %623 = vsyncpa [#allocation7], 1
    %s624 = scalar_lea.sflag [#allocation7], 1
    %625 = vsyncpa %s624, 1

</llo_original>
